<compile_context>
chip_gen: v7x
topology: tpu7x:2x2x1
jax: 0.10.0
libtpu: 0.0.40
codegen_flags: <defaults>
</compile_context>

<pallas_src>
import functools

import jax
import jax.numpy as jnp
from jax.experimental import pallas as pl
from jax.experimental.pallas import tpu as pltpu


_LANE = 128            # pad the tiny num_classes axis up to one full lane group
_NEG_INF = -1e30       # pad-lane bias so log_softmax ignores padded classes
_TM_TIERS = (8, 64, 256, 512, 1024)   # fixed tile tiers -> no per-batch retrace
_MEGACORE_MIN_BATCH = 512             # only force >=2 grid steps above this
_VMEM_LIMIT_BYTES = 48 * 1024 * 1024  # TM=1024 peak ~27 MiB; fits v7x 64 MiB/TC


def _round_up(n, m):
    return ((n + m - 1) // m) * m


def _vmem_limit_bytes():
    """Generation-aware VMEM budget (v7x: 64 MiB/TC, v5e/v6e: 128 MiB)."""
    try:
        cap = int(pltpu.get_tpu_info().vmem_capacity_bytes)
        return min(_VMEM_LIMIT_BYTES, (cap * 3) // 4)
    except Exception:  # older jax / info unavailable: fixed safe default
        return _VMEM_LIMIT_BYTES


def _pick_tm(batch, block_m):
    """Batch tile from fixed tiers; keep >=2 grid steps (v7x megacore) when
    the batch is big enough to be worth splitting across TensorCores."""
    tiers = tuple(t for t in _TM_TIERS if t <= block_m) or (_TM_TIERS[0],)
    tm = next((t for t in tiers if t >= batch), tiers[-1])
    if batch >= _MEGACORE_MIN_BATCH and (batch + tm - 1) // tm < 2:
        lower = [t for t in tiers if t < tm]
        if lower:
            tm = lower[-1]
    return tm


def _resident_spec(shape):
    """Constant-index-map (VMEM-resident) operand; single-buffered since it
    is re-used unchanged on every grid step (saves ~1.3 MiB of double
    buffers, most useful on v7x's 64 MiB VMEM)."""
    try:
        return pl.BlockSpec(shape, lambda i: (0, 0),
                            pipeline_mode=pl.Buffered(1))
    except TypeError:  # older jax without pipeline_mode kwarg
        return pl.BlockSpec(shape, lambda i: (0, 0))


def _relation_mlp_kernel(x_ref, w1_ref, b1_ref, w2_ref, b2_ref, w3_ref, b3_ref,
                         o_ref):
    """One (TM, 2*D) batch tile -> one lane-dense (TM, 128) log-prob tile."""
    x = x_ref[...]                                   # (TM, 2*D)
    d = x.shape[1] // 2
    # x.view(B, 2, D).mean(dim=1): sum of the two halves; the 0.5 factor is
    # folded into w1 (done once in fold_params).  Cheap VPU add hidden under
    # the DMA/MXU -- intentionally NOT folded into a (2D, 512) weight.
    xm = (x[:, :d] + x[:, d:]).astype(w1_ref.dtype)  # (TM, D) bf16

    # fc1 (+ folded 0.5 mean + BN1 affine) -> relu      [dropout = identity]
    h1 = jnp.dot(xm, w1_ref[...], preferred_element_type=jnp.float32)
    h1 = jnp.maximum(h1 + b1_ref[...], 0.0)          # f32 elementwise

    # fc2 (+ folded BN2 affine) -> relu                 [dropout = identity]
    h2 = jnp.dot(h1.astype(w2_ref.dtype), w2_ref[...],
                 preferred_element_type=jnp.float32)
    h2 = jnp.maximum(h2 + b2_ref[...], 0.0)

    # fc3 (lane-padded to 128 classes) -> log_softmax over the padded lanes.
    # Pad lanes carry bias -1e30, so they contribute exp(-huge) == 0.
    logits = jnp.dot(h2.astype(w3_ref.dtype), w3_ref[...],
                     preferred_element_type=jnp.float32) + b3_ref[...]
    m = jnp.max(logits, axis=-1, keepdims=True)
    lse = jnp.log(jnp.sum(jnp.exp(logits - m), axis=-1, keepdims=True)) + m
    o_ref[...] = logits - lse


def fold_params(w1, b1, s1, t1, w2, b2, s2, t2, w3, b3,
                weight_dtype=jnp.bfloat16):
    """One-time constant fold of BN affines, the 0.5 mean factor and the
    num_classes -> 128 lane padding. Weights cast to bf16, biases stay f32."""
    num_classes = w3.shape[1]
    w1f = (0.5 * w1 * s1).astype(weight_dtype)                 # (D, 512)
    b1f = (b1 * s1 + t1).astype(jnp.float32)                   # (1, 512)
    w2f = (w2 * s2).astype(weight_dtype)                       # (512, 256)
    b2f = (b2 * s2 + t2).astype(jnp.float32)                   # (1, 256)
    pad = _LANE - num_classes
    w3f = jnp.pad(w3, ((0, 0), (0, pad))).astype(weight_dtype)           # (256, 128)
    b3f = jnp.pad(b3, ((0, 0), (0, pad)),
                  constant_values=_NEG_INF).astype(jnp.float32)          # (1, 128)
    return w1f, b1f, w2f, b2f, w3f, b3f


@functools.partial(jax.jit, static_argnames=("num_classes", "block_m"))
def relation_mlp_forward(x, w1f, b1f, w2f, b2f, w3f, b3f, *,
                         num_classes=2, block_m=1024):
    batch, two_d = x.shape
    d = two_d // 2

    # Tiered batch tile (multiple of 8 sublanes); pad batch to a whole number
    # of tiles -- padded rows are sliced off at the end.
    tm = _pick_tm(batch, block_m)
    b_pad = _round_up(batch, tm)
    if b_pad != batch:
        x = jnp.pad(x, ((0, b_pad - batch), (0, 0)))
    grid = (b_pad // tm,)

    in_specs = [
        pl.BlockSpec((tm, two_d), lambda i: (i, 0)),   # x tile streams over grid
        _resident_spec(w1f.shape),                      # weights stay VMEM-resident
        _resident_spec(b1f.shape),
        _resident_spec(w2f.shape),
        _resident_spec(b2f.shape),
        _resident_spec(w3f.shape),
        _resident_spec(b3f.shape),
    ]
    out_specs = pl.BlockSpec((tm, _LANE), lambda i: (i, 0))

    flops = 2 * b_pad * (d * w1f.shape[1]
                         + w2f.shape[0] * w2f.shape[1]
                         + w3f.shape[0] * _LANE)
    bytes_accessed = (x.size * x.dtype.itemsize
                      + sum(a.size * a.dtype.itemsize
                            for a in (w1f, b1f, w2f, b2f, w3f, b3f))
                      + b_pad * _LANE * 4)

    out = pl.pallas_call(
        _relation_mlp_kernel,
        grid=grid,
        in_specs=in_specs,
        out_specs=out_specs,
        out_shape=jax.ShapeDtypeStruct((b_pad, _LANE), jnp.float32),
        compiler_params=pltpu.CompilerParams(
            dimension_semantics=("parallel",),          # megacore on v7x
            vmem_limit_bytes=_vmem_limit_bytes()),      # generation-aware
        cost_estimate=pl.CostEstimate(
            flops=flops,
            transcendentals=b_pad * _LANE,
            bytes_accessed=bytes_accessed),
    )(x, w1f, b1f, w2f, b2f, w3f, b3f)

    return out[:batch, :num_classes]


def make_params(key, input_size=1024, num_classes=2):
    ks = jax.random.split(key, 14)
    eps = 1e-5

    def linear(kw, kb, fan_in, fan_out):
        bound = 1.0 / jnp.sqrt(fan_in)
        w = jax.random.uniform(kw, (fan_in, fan_out), jnp.float32, -bound, bound)
        b = jax.random.uniform(kb, (1, fan_out), jnp.float32, -bound, bound)
        return w, b

    w1, b1 = linear(ks[0], ks[1], input_size, 512)
    w2, b2 = linear(ks[2], ks[3], 512, 256)
    w3, b3 = linear(ks[4], ks[5], 256, num_classes)

    def bn(kg, kb, km, kv, n):
        gamma = 1.0 + 0.1 * jax.random.normal(kg, (1, n), jnp.float32)
        beta = 0.1 * jax.random.normal(kb, (1, n), jnp.float32)
        mean = 0.1 * jax.random.normal(km, (1, n), jnp.float32)
        var = 1.0 + 0.1 * jnp.abs(jax.random.normal(kv, (1, n), jnp.float32))
        scale = gamma / jnp.sqrt(var + eps)
        shift = beta - mean * scale
        return scale, shift

    s1, t1 = bn(ks[6], ks[7], ks[8], ks[9], 512)
    s2, t2 = bn(ks[10], ks[11], ks[12], ks[13], 256)

    return (w1, b1, s1, t1, w2, b2, s2, t2, w3, b3)


def reference_forward(x, w1, b1, s1, t1, w2, b2, s2, t2, w3, b3):
    d = x.shape[1] // 2
    xm = 0.5 * (x[:, :d] + x[:, d:])
    h1 = jnp.maximum((xm @ w1 + b1) * s1 + t1, 0.0)
    h2 = jnp.maximum((h1 @ w2 + b2) * s2 + t2, 0.0)
    logits = h2 @ w3 + b3
    return jax.nn.log_softmax(logits, axis=1)


if __name__ == "__main__":
    key = jax.random.PRNGKey(0)
    k_x, k_x2, k_p = jax.random.split(key, 3)

    batch, input_size, num_classes = 8, 1024, 2
    params = make_params(k_p, input_size=input_size, num_classes=num_classes)
    folded = fold_params(*params)                      # one-time constant fold

    # Small-batch (latency) case: single grid step, TM tier = 8.
    x = jax.random.normal(k_x, (batch, 2 * input_size), jnp.float32)
    out = relation_mlp_forward(x, *folded, num_classes=num_classes)
    out = jax.block_until_ready(out)
    ref = reference_forward(x, *params)
    assert out.shape == (batch, num_classes)
    assert jnp.allclose(out, ref, atol=2e-2, rtol=2e-2), "mismatch vs reference"

    # Larger batch: exercises row padding AND the >=2-grid-step megacore path
    # (batch=600 -> TM drops 1024 -> 512, grid=(2,)).
    batch2 = 600
    x2 = jax.random.normal(k_x2, (batch2, 2 * input_size), jnp.float32)
    out2 = relation_mlp_forward(x2, *folded, num_classes=num_classes)
    out2 = jax.block_until_ready(out2)
    ref2 = reference_forward(x2, *params)
    assert out2.shape == (batch2, num_classes)
    assert jnp.allclose(out2, ref2, atol=2e-2, rtol=2e-2), "mismatch vs reference (gridded)"

    print("KERNEL_OK")
</pallas_src>

<mosaic_0001>
module attributes {stable_mosaic.version = 11 : i64} {
  func.func @_relation_mlp_kernel(%arg0: i32, %arg1: memref<8x2048xf32, #tpu.memory_space<vmem>>, %arg2: memref<1024x512xbf16, #tpu.memory_space<vmem>>, %arg3: memref<1x512xf32, #tpu.memory_space<vmem>>, %arg4: memref<512x256xbf16, #tpu.memory_space<vmem>>, %arg5: memref<1x256xf32, #tpu.memory_space<vmem>>, %arg6: memref<256x128xbf16, #tpu.memory_space<vmem>>, %arg7: memref<1x128xf32, #tpu.memory_space<vmem>>, %arg8: memref<8x128xf32, #tpu.memory_space<vmem>>) attributes {dimension_semantics = [#tpu.dimension_semantics<parallel>], iteration_bounds = array<i64: 1>, scalar_prefetch = 0 : i64, scratch_operands = 0 : i64, tpu.core_type = #tpu.core_type<tc>, window_params = [{transform_indices = @transform_0, window_bounds = array<i64: 8, 2048>}, {pipeline_mode = #tpu.pipeline_mode<synchronous>, transform_indices = @transform_1, window_bounds = array<i64: 1024, 512>}, {pipeline_mode = #tpu.pipeline_mode<synchronous>, transform_indices = @transform_2, window_bounds = array<i64: 1, 512>}, {pipeline_mode = #tpu.pipeline_mode<synchronous>, transform_indices = @transform_3, window_bounds = array<i64: 512, 256>}, {pipeline_mode = #tpu.pipeline_mode<synchronous>, transform_indices = @transform_4, window_bounds = array<i64: 1, 256>}, {pipeline_mode = #tpu.pipeline_mode<synchronous>, transform_indices = @transform_5, window_bounds = array<i64: 256, 128>}, {pipeline_mode = #tpu.pipeline_mode<synchronous>, transform_indices = @transform_6, window_bounds = array<i64: 1, 128>}, {transform_indices = @transform_7, window_bounds = array<i64: 8, 128>}]} {
    %c0 = arith.constant 0 : index
    %c0_0 = arith.constant 0 : index
    %0 = vector.load %arg1[%c0, %c0_0] : memref<8x2048xf32, #tpu.memory_space<vmem>>, vector<8x2048xf32>
    %1 = vector.extract_strided_slice %0 {offsets = [0, 0], sizes = [8, 1024], strides = [1, 1]} : vector<8x2048xf32> to vector<8x1024xf32>
    %2 = vector.extract_strided_slice %0 {offsets = [0, 1024], sizes = [8, 1024], strides = [1, 1]} : vector<8x2048xf32> to vector<8x1024xf32>
    %3 = arith.addf %1, %2 : vector<8x1024xf32>
    %4 = arith.truncf %3 : vector<8x1024xf32> to vector<8x1024xbf16>
    %c0_1 = arith.constant 0 : index
    %c0_2 = arith.constant 0 : index
    %5 = vector.load %arg2[%c0_1, %c0_2] : memref<1024x512xbf16, #tpu.memory_space<vmem>>, vector<1024x512xbf16>
    %cst = arith.constant dense<0.000000e+00> : vector<8x512xf32>
    %6 = tpu.matmul %4, %5, %cst {dimension_numbers = #tpu.dot_dimension_numbers<[1], [0], [0], [1], [0, 0, 1, 1], [], []>} : vector<8x1024xbf16>, vector<1024x512xbf16>, vector<8x512xf32> -> vector<8x512xf32>
    %c0_3 = arith.constant 0 : index
    %c0_4 = arith.constant 0 : index
    %7 = vector.load %arg3[%c0_3, %c0_4] : memref<1x512xf32, #tpu.memory_space<vmem>>, vector<1x512xf32>
    %8 = vector.broadcast %7 : vector<1x512xf32> to vector<8x512xf32>
    %9 = arith.addf %6, %8 : vector<8x512xf32>
    %cst_5 = arith.constant 0.000000e+00 : f32
    %10 = vector.broadcast %cst_5 : f32 to vector<8x512xf32>
    %11 = arith.maximumf %9, %10 : vector<8x512xf32>
    %12 = arith.truncf %11 : vector<8x512xf32> to vector<8x512xbf16>
    %c0_6 = arith.constant 0 : index
    %c0_7 = arith.constant 0 : index
    %13 = vector.load %arg4[%c0_6, %c0_7] : memref<512x256xbf16, #tpu.memory_space<vmem>>, vector<512x256xbf16>
    %cst_8 = arith.constant dense<0.000000e+00> : vector<8x256xf32>
    %14 = tpu.matmul %12, %13, %cst_8 {dimension_numbers = #tpu.dot_dimension_numbers<[1], [0], [0], [1], [0, 0, 1, 1], [], []>} : vector<8x512xbf16>, vector<512x256xbf16>, vector<8x256xf32> -> vector<8x256xf32>
    %c0_9 = arith.constant 0 : index
    %c0_10 = arith.constant 0 : index
    %15 = vector.load %arg5[%c0_9, %c0_10] : memref<1x256xf32, #tpu.memory_space<vmem>>, vector<1x256xf32>
    %16 = vector.broadcast %15 : vector<1x256xf32> to vector<8x256xf32>
    %17 = arith.addf %14, %16 : vector<8x256xf32>
    %cst_11 = arith.constant 0.000000e+00 : f32
    %18 = vector.broadcast %cst_11 : f32 to vector<8x256xf32>
    %19 = arith.maximumf %17, %18 : vector<8x256xf32>
    %20 = arith.truncf %19 : vector<8x256xf32> to vector<8x256xbf16>
    %c0_12 = arith.constant 0 : index
    %c0_13 = arith.constant 0 : index
    %21 = vector.load %arg6[%c0_12, %c0_13] : memref<256x128xbf16, #tpu.memory_space<vmem>>, vector<256x128xbf16>
    %cst_14 = arith.constant dense<0.000000e+00> : vector<8x128xf32>
    %22 = tpu.matmul %20, %21, %cst_14 {dimension_numbers = #tpu.dot_dimension_numbers<[1], [0], [0], [1], [0, 0, 1, 1], [], []>} : vector<8x256xbf16>, vector<256x128xbf16>, vector<8x128xf32> -> vector<8x128xf32>
    %c0_15 = arith.constant 0 : index
    %c0_16 = arith.constant 0 : index
    %23 = vector.load %arg7[%c0_15, %c0_16] : memref<1x128xf32, #tpu.memory_space<vmem>>, vector<1x128xf32>
    %24 = vector.broadcast %23 : vector<1x128xf32> to vector<8x128xf32>
    %25 = arith.addf %22, %24 : vector<8x128xf32>
    %cst_17 = arith.constant dense<0xFF800000> : vector<8xf32>
    %26 = vector.multi_reduction <maximumf>, %25, %cst_17 [1] : vector<8x128xf32> to vector<8xf32>
    %27 = vector.shape_cast %26 : vector<8xf32> to vector<8x1xf32>
    %28 = vector.broadcast %27 : vector<8x1xf32> to vector<8x128xf32>
    %29 = arith.subf %25, %28 : vector<8x128xf32>
    %30 = math.exp %29 : vector<8x128xf32>
    %cst_18 = arith.constant dense<0.000000e+00> : vector<8xf32>
    %31 = vector.multi_reduction <add>, %30, %cst_18 [1] : vector<8x128xf32> to vector<8xf32>
    %32 = vector.shape_cast %31 : vector<8xf32> to vector<8x1xf32>
    %33 = math.log %32 : vector<8x1xf32>
    %34 = arith.addf %33, %27 : vector<8x1xf32>
    %35 = vector.broadcast %34 : vector<8x1xf32> to vector<8x128xf32>
    %36 = arith.subf %25, %35 : vector<8x128xf32>
    %c0_19 = arith.constant 0 : index
    %c0_20 = arith.constant 0 : index
    %37 = vector.load %arg8[%c0_19, %c0_20] : memref<8x128xf32, #tpu.memory_space<vmem>>, vector<8x128xf32>
    tpu.vector_store %arg8[%c0_19, %c0_20], %36 {strides = array<i32>} : memref<8x128xf32, #tpu.memory_space<vmem>>, vector<8x128xf32>,
    return
  }
  func.func @transform_0(%arg0: i32) -> (i32, i32) {
    %c0_i32 = arith.constant 0 : i32
    %c0_i32_0 = arith.constant 0 : i32
    return %arg0, %c0_i32 : i32, i32
  }
  func.func @transform_1(%arg0: i32) -> (i32, i32) {
    %c0_i32 = arith.constant 0 : i32
    %c0_i32_0 = arith.constant 0 : i32
    %c0_i32_1 = arith.constant 0 : i32
    return %c0_i32, %c0_i32_0 : i32, i32
  }
  func.func @transform_2(%arg0: i32) -> (i32, i32) {
    %c0_i32 = arith.constant 0 : i32
    %c0_i32_0 = arith.constant 0 : i32
    %c0_i32_1 = arith.constant 0 : i32
    return %c0_i32, %c0_i32_0 : i32, i32
  }
  func.func @transform_3(%arg0: i32) -> (i32, i32) {
    %c0_i32 = arith.constant 0 : i32
    %c0_i32_0 = arith.constant 0 : i32
    %c0_i32_1 = arith.constant 0 : i32
    return %c0_i32, %c0_i32_0 : i32, i32
  }
  func.func @transform_4(%arg0: i32) -> (i32, i32) {
    %c0_i32 = arith.constant 0 : i32
    %c0_i32_0 = arith.constant 0 : i32
    %c0_i32_1 = arith.constant 0 : i32
    return %c0_i32, %c0_i32_0 : i32, i32
  }
  func.func @transform_5(%arg0: i32) -> (i32, i32) {
    %c0_i32 = arith.constant 0 : i32
    %c0_i32_0 = arith.constant 0 : i32
    %c0_i32_1 = arith.constant 0 : i32
    return %c0_i32, %c0_i32_0 : i32, i32
  }
  func.func @transform_6(%arg0: i32) -> (i32, i32) {
    %c0_i32 = arith.constant 0 : i32
    %c0_i32_0 = arith.constant 0 : i32
    %c0_i32_1 = arith.constant 0 : i32
    return %c0_i32, %c0_i32_0 : i32, i32
  }
  func.func @transform_7(%arg0: i32) -> (i32, i32) {
    %c0_i32 = arith.constant 0 : i32
    %c0_i32_0 = arith.constant 0 : i32
    return %arg0, %c0_i32 : i32, i32
  }
}

</mosaic_0001>

<llo_original>
// kernel: relation_mlp_forward.1
$region0: #{relation_mlp_forward.1}
  #allocation0 [shape = 'u32[]', space=smem, size = 0x4, offset = 0x4, fixed_abs, tag = 'smem constant byte address 0x4 - core index']
  #allocation1 [shape = 'u32[144,128]{1,0:T(1,128)}', space=vmem, size = 0x12000, scoped, tag = 'internal scratch']
  %s0 = inlined_call_operand.hbm [shape: f32[8,2048], index: 0, kind: input, shape index: {}]
  %s1 = inlined_call_operand.hbm [shape: bf16[1024,512], index: 1, kind: input, shape index: {}]
  %s2 = inlined_call_operand.vmem [shape: f32[1,512], index: 2, kind: input, shape index: {}]
  %s3 = inlined_call_operand.hbm [shape: bf16[512,256], index: 3, kind: input, shape index: {}]
  %s4 = inlined_call_operand.vmem [shape: f32[1,256], index: 4, kind: input, shape index: {}]
  %s5 = inlined_call_operand.hbm [shape: bf16[256,128], index: 5, kind: input, shape index: {}]
  %s6 = inlined_call_operand.vmem [shape: f32[1,128], index: 6, kind: input, shape index: {}]
  %s7 = inlined_call_operand.vmem [shape: f32[8,128], index: 7, kind: output, shape index: {}]
  %s8 = sld [smem:[#allocation0]]
  $region54: #{relation_mlp_forward.1} parent=0
    _
  %s10 = ssub.s32 1, %s8
  %s11 = scalar_select 0, %s10, %s8
  $region1: #{relation_mlp_forward.1} parent=0
    #allocation2 [shape = 'u8[65536]{0}', space=vmem, size = 0x10000, scoped, tag = 'input window, operand 0, single buffered']
    #allocation3 [shape = 's32[1]{0}', space=sflag, size = 0x4, scoped, tag = 'scoped memory for relation_mlp_forward.1']
    #allocation4 [shape = 'u8[1048576]{0}', space=vmem, size = 0x100000, scoped, tag = 'input window, operand 1, single buffered']
    #allocation5 [shape = 's32[1]{0}', space=sflag, size = 0x4, scoped, tag = 'scoped memory for relation_mlp_forward.1']
    #allocation6 [shape = 'u8[262144]{0}', space=vmem, size = 0x40000, scoped, tag = 'input window, operand 3, single buffered']
    #allocation7 [shape = 'u8[65536]{0}', space=vmem, size = 0x10000, scoped, tag = 'input window, operand 5, single buffered']
    #allocation8 [shape = 's32[1]{0}', space=sflag, size = 0x4, scoped, tag = 'scoped memory for relation_mlp_forward.1']
    %12 = vsyncpa [#allocation3], 0
    %13 = vsyncpa [#allocation5], 0
    %14 = vsyncpa [#allocation8], 0
    // Predicated region
    $region2: #{relation_mlp_forward.1} parent=1 // pred_check
      _
    $region3: #{relation_mlp_forward.1} parent=1 // pred_check_branch
      %16 = sbr.rel (0) target = $region5
    $region4: #{relation_mlp_forward.1} parent=1 // pred_region
      %s18 = ssub.s32 2048, 2048
      %19 = vsyncadd [#allocation3], %s18
      %s21 = sshll.u32 [#allocation2], 4
      %s22 = int_to_ptr.vmem [resolvable:$true] %s21
      %24 = dma.hbm_to_vmem [thread:$0]  %s0, 2048, %s22, [#allocation3]
    $region5: #{relation_mlp_forward.1} parent=1 // pred_fallthru
      _
    // Predicated region
    $region6: #{relation_mlp_forward.1} parent=1 // pred_check
      _
    $region7: #{relation_mlp_forward.1} parent=1 // pred_check_branch
      %26 = sbr.rel (0) target = $region9
    $region8: #{relation_mlp_forward.1} parent=1 // pred_region
      %s28 = ssub.s32 32768, 32768
      %29 = vsyncadd [#allocation5], %s28
      %s30 = sshll.u32 [#allocation4], 4
      %s31 = int_to_ptr.vmem [resolvable:$true] %s30
      %36 = dma.hbm_to_vmem [thread:$0]  %s1, 32768, %s31, [#allocation5], 256, 256, 16
    $region9: #{relation_mlp_forward.1} parent=1 // pred_fallthru
      _
    // Predicated region
    $region10: #{relation_mlp_forward.1} parent=1 // pred_check
      _
    $region11: #{relation_mlp_forward.1} parent=1 // pred_check_branch
      %38 = sbr.rel (0) target = $region13
    $region12: #{relation_mlp_forward.1} parent=1 // pred_region
      _
    $region13: #{relation_mlp_forward.1} parent=1 // pred_fallthru
      _
    // Predicated region
    $region14: #{relation_mlp_forward.1} parent=1 // pred_check
      _
    $region15: #{relation_mlp_forward.1} parent=1 // pred_check_branch
      %40 = sbr.rel (0) target = $region17
    $region16: #{relation_mlp_forward.1} parent=1 // pred_region
      %s42 = ssub.s32 8192, 8192
      %43 = vsyncadd [#allocation5], %s42
      %s44 = sshll.u32 [#allocation6], 4
      %s45 = int_to_ptr.vmem [resolvable:$true] %s44
      %50 = dma.hbm_to_vmem [thread:$0]  %s3, 8192, %s45, [#allocation5], 128, 128, 8
    $region17: #{relation_mlp_forward.1} parent=1 // pred_fallthru
      _
    // Predicated region
    $region18: #{relation_mlp_forward.1} parent=1 // pred_check
      _
    $region19: #{relation_mlp_forward.1} parent=1 // pred_check_branch
      %52 = sbr.rel (0) target = $region21
    $region20: #{relation_mlp_forward.1} parent=1 // pred_region
      _
    $region21: #{relation_mlp_forward.1} parent=1 // pred_fallthru
      _
    // Predicated region
    $region22: #{relation_mlp_forward.1} parent=1 // pred_check
      _
    $region23: #{relation_mlp_forward.1} parent=1 // pred_check_branch
      %54 = sbr.rel (0) target = $region25
    $region24: #{relation_mlp_forward.1} parent=1 // pred_region
      %s56 = ssub.s32 2048, 2048
      %57 = vsyncadd [#allocation8], %s56
      %s58 = sshll.u32 [#allocation7], 4
      %s59 = int_to_ptr.vmem [resolvable:$true] %s58
      %64 = dma.hbm_to_vmem [thread:$0]  %s5, 2048, %s59, [#allocation8], 64, 64, 4
    $region25: #{relation_mlp_forward.1} parent=1 // pred_fallthru
      _
    // Predicated region
    $region26: #{relation_mlp_forward.1} parent=1 // pred_check
      _
    $region27: #{relation_mlp_forward.1} parent=1 // pred_check_branch
      %66 = sbr.rel (0) target = $region29
    $region28: #{relation_mlp_forward.1} parent=1 // pred_region
      _
    $region29: #{relation_mlp_forward.1} parent=1 // pred_fallthru
      _
    // Predicated region
    $region30: #{relation_mlp_forward.1} parent=1 // pred_check
      _
    $region31: #{relation_mlp_forward.1} parent=1 // pred_check_branch
      %68 = sbr.rel (0) target = $region33
    $region32: #{relation_mlp_forward.1} parent=1 // pred_region
      %69 = dma.done [#allocation3], 2048
    $region33: #{relation_mlp_forward.1} parent=1 // pred_fallthru
      _
    // Predicated region
    $region34: #{relation_mlp_forward.1} parent=1 // pred_check
      _
    $region35: #{relation_mlp_forward.1} parent=1 // pred_check_branch
      %71 = sbr.rel (0) target = $region37
    $region36: #{relation_mlp_forward.1} parent=1 // pred_region
      %72 = dma.done [#allocation5], 32768
    $region37: #{relation_mlp_forward.1} parent=1 // pred_fallthru
      _
    // Predicated region
    $region38: #{relation_mlp_forward.1} parent=1 // pred_check
      _
    $region39: #{relation_mlp_forward.1} parent=1 // pred_check_branch
      %74 = sbr.rel (0) target = $region41
    $region40: #{relation_mlp_forward.1} parent=1 // pred_region
      %75 = dma.done [#allocation5], 8192
    $region41: #{relation_mlp_forward.1} parent=1 // pred_fallthru
      _
    // Predicated region
    $region42: #{relation_mlp_forward.1} parent=1 // pred_check
      _
    $region43: #{relation_mlp_forward.1} parent=1 // pred_check_branch
      %77 = sbr.rel (0) target = $region45
    $region44: #{relation_mlp_forward.1} parent=1 // pred_region
      %78 = dma.done [#allocation8], 2048
    $region45: #{relation_mlp_forward.1} parent=1 // pred_fallthru
      _
    %v80 = vld [vmem:[#allocation2] sm:$0xff]
    %v81 = vld [vmem:[#allocation2 + $0x8] sm:$0xff]
    %v82 = vld [vmem:[#allocation2 + $0x10] sm:$0xff]
    %v83 = vld [vmem:[#allocation2 + $0x18] sm:$0xff]
    %v84 = vld [vmem:[#allocation2 + $0x20] sm:$0xff]
    %v85 = vld [vmem:[#allocation2 + $0x28] sm:$0xff]
    %v86 = vld [vmem:[#allocation2 + $0x30] sm:$0xff]
    %v87 = vld [vmem:[#allocation2 + $0x38] sm:$0xff]
    %v88 = vld [vmem:[#allocation2 + $0x40] sm:$0xff]
    %v89 = vld [vmem:[#allocation2 + $0x48] sm:$0xff]
    %v90 = vld [vmem:[#allocation2 + $0x50] sm:$0xff]
    %v91 = vld [vmem:[#allocation2 + $0x58] sm:$0xff]
    %v92 = vld [vmem:[#allocation2 + $0x60] sm:$0xff]
    %v93 = vld [vmem:[#allocation2 + $0x68] sm:$0xff]
    %v94 = vld [vmem:[#allocation2 + $0x70] sm:$0xff]
    %v95 = vld [vmem:[#allocation2 + $0x78] sm:$0xff]
    %v96 = vadd.f32 %v80, %v88
    %v97 = vadd.f32 %v81, %v89
    %v98 = vadd.f32 %v82, %v90
    %v99 = vadd.f32 %v83, %v91
    %v100 = vadd.f32 %v84, %v92
    %v101 = vadd.f32 %v85, %v93
    %v102 = vadd.f32 %v86, %v94
    %v103 = vadd.f32 %v87, %v95
    %v104 = vpack.c.bf16 %v96, %v96
    %v105 = vpack.c.bf16 %v97, %v97
    %v106 = vpack.c.bf16 %v98, %v98
    %v107 = vpack.c.bf16 %v99, %v99
    %v108 = vpack.c.bf16 %v100, %v100
    %v109 = vpack.c.bf16 %v101, %v101
    %v110 = vpack.c.bf16 %v102, %v102
    %v111 = vpack.c.bf16 %v103, %v103
    %v112 = vld [vmem:[#allocation4] sm:$0xff]
    %v113 = vld [vmem:[#allocation4 + $0x8] sm:$0xff]
    %v114 = vld [vmem:[#allocation4 + $0x10] sm:$0xff]
    %v115 = vld [vmem:[#allocation4 + $0x18] sm:$0xff]
    %v116 = vld [vmem:[#allocation4 + $0x20] sm:$0xff]
    %v117 = vld [vmem:[#allocation4 + $0x28] sm:$0xff]
    %v118 = vld [vmem:[#allocation4 + $0x30] sm:$0xff]
    %v119 = vld [vmem:[#allocation4 + $0x38] sm:$0xff]
    %v120 = vld [vmem:[#allocation4 + $0x40] sm:$0xff]
    %v121 = vld [vmem:[#allocation4 + $0x48] sm:$0xff]
    %v122 = vld [vmem:[#allocation4 + $0x50] sm:$0xff]
    %v123 = vld [vmem:[#allocation4 + $0x58] sm:$0xff]
    %v124 = vld [vmem:[#allocation4 + $0x60] sm:$0xff]
    %v125 = vld [vmem:[#allocation4 + $0x68] sm:$0xff]
    %v126 = vld [vmem:[#allocation4 + $0x70] sm:$0xff]
    %v127 = vld [vmem:[#allocation4 + $0x78] sm:$0xff]
    %v128 = vld [vmem:[#allocation4 + $0x80] sm:$0xff]
    %v129 = vld [vmem:[#allocation4 + $0x88] sm:$0xff]
    %v130 = vld [vmem:[#allocation4 + $0x90] sm:$0xff]
    %v131 = vld [vmem:[#allocation4 + $0x98] sm:$0xff]
    %v132 = vld [vmem:[#allocation4 + $0xa0] sm:$0xff]
    %v133 = vld [vmem:[#allocation4 + $0xa8] sm:$0xff]
    %v134 = vld [vmem:[#allocation4 + $0xb0] sm:$0xff]
    %v135 = vld [vmem:[#allocation4 + $0xb8] sm:$0xff]
    %v136 = vld [vmem:[#allocation4 + $0xc0] sm:$0xff]
    %v137 = vld [vmem:[#allocation4 + $0xc8] sm:$0xff]
    %v138 = vld [vmem:[#allocation4 + $0xd0] sm:$0xff]
    %v139 = vld [vmem:[#allocation4 + $0xd8] sm:$0xff]
    %v140 = vld [vmem:[#allocation4 + $0xe0] sm:$0xff]
    %v141 = vld [vmem:[#allocation4 + $0xe8] sm:$0xff]
    %v142 = vld [vmem:[#allocation4 + $0xf0] sm:$0xff]
    %v143 = vld [vmem:[#allocation4 + $0xf8] sm:$0xff]
    %v144 = vld [vmem:[#allocation4 + $0x100] sm:$0xff]
    %v145 = vld [vmem:[#allocation4 + $0x108] sm:$0xff]
    %v146 = vld [vmem:[#allocation4 + $0x110] sm:$0xff]
    %v147 = vld [vmem:[#allocation4 + $0x118] sm:$0xff]
    %v148 = vld [vmem:[#allocation4 + $0x120] sm:$0xff]
    %v149 = vld [vmem:[#allocation4 + $0x128] sm:$0xff]
    %v150 = vld [vmem:[#allocation4 + $0x130] sm:$0xff]
    %v151 = vld [vmem:[#allocation4 + $0x138] sm:$0xff]
    %v152 = vld [vmem:[#allocation4 + $0x140] sm:$0xff]
    %v153 = vld [vmem:[#allocation4 + $0x148] sm:$0xff]
    %v154 = vld [vmem:[#allocation4 + $0x150] sm:$0xff]
    %v155 = vld [vmem:[#allocation4 + $0x158] sm:$0xff]
    %v156 = vld [vmem:[#allocation4 + $0x160] sm:$0xff]
    %v157 = vld [vmem:[#allocation4 + $0x168] sm:$0xff]
    %v158 = vld [vmem:[#allocation4 + $0x170] sm:$0xff]
    %v159 = vld [vmem:[#allocation4 + $0x178] sm:$0xff]
    %v160 = vld [vmem:[#allocation4 + $0x180] sm:$0xff]
    %v161 = vld [vmem:[#allocation4 + $0x188] sm:$0xff]
    %v162 = vld [vmem:[#allocation4 + $0x190] sm:$0xff]
    %v163 = vld [vmem:[#allocation4 + $0x198] sm:$0xff]
    %v164 = vld [vmem:[#allocation4 + $0x1a0] sm:$0xff]
    %v165 = vld [vmem:[#allocation4 + $0x1a8] sm:$0xff]
    %v166 = vld [vmem:[#allocation4 + $0x1b0] sm:$0xff]
    %v167 = vld [vmem:[#allocation4 + $0x1b8] sm:$0xff]
    %v168 = vld [vmem:[#allocation4 + $0x1c0] sm:$0xff]
    %v169 = vld [vmem:[#allocation4 + $0x1c8] sm:$0xff]
    %v170 = vld [vmem:[#allocation4 + $0x1d0] sm:$0xff]
    %v171 = vld [vmem:[#allocation4 + $0x1d8] sm:$0xff]
    %v172 = vld [vmem:[#allocation4 + $0x1e0] sm:$0xff]
    %v173 = vld [vmem:[#allocation4 + $0x1e8] sm:$0xff]
    %v174 = vld [vmem:[#allocation4 + $0x1f0] sm:$0xff]
    %v175 = vld [vmem:[#allocation4 + $0x1f8] sm:$0xff]
    %v176 = vld [vmem:[#allocation4 + $0x200] sm:$0xff]
    %v177 = vld [vmem:[#allocation4 + $0x208] sm:$0xff]
    %v178 = vld [vmem:[#allocation4 + $0x210] sm:$0xff]
    %v179 = vld [vmem:[#allocation4 + $0x218] sm:$0xff]
    %v180 = vld [vmem:[#allocation4 + $0x220] sm:$0xff]
    %v181 = vld [vmem:[#allocation4 + $0x228] sm:$0xff]
    %v182 = vld [vmem:[#allocation4 + $0x230] sm:$0xff]
    %v183 = vld [vmem:[#allocation4 + $0x238] sm:$0xff]
    %v184 = vld [vmem:[#allocation4 + $0x240] sm:$0xff]
    %v185 = vld [vmem:[#allocation4 + $0x248] sm:$0xff]
    %v186 = vld [vmem:[#allocation4 + $0x250] sm:$0xff]
    %v187 = vld [vmem:[#allocation4 + $0x258] sm:$0xff]
    %v188 = vld [vmem:[#allocation4 + $0x260] sm:$0xff]
    %v189 = vld [vmem:[#allocation4 + $0x268] sm:$0xff]
    %v190 = vld [vmem:[#allocation4 + $0x270] sm:$0xff]
    %v191 = vld [vmem:[#allocation4 + $0x278] sm:$0xff]
    %v192 = vld [vmem:[#allocation4 + $0x280] sm:$0xff]
    %v193 = vld [vmem:[#allocation4 + $0x288] sm:$0xff]
    %v194 = vld [vmem:[#allocation4 + $0x290] sm:$0xff]
    %v195 = vld [vmem:[#allocation4 + $0x298] sm:$0xff]
    %v196 = vld [vmem:[#allocation4 + $0x2a0] sm:$0xff]
    %v197 = vld [vmem:[#allocation4 + $0x2a8] sm:$0xff]
    %v198 = vld [vmem:[#allocation4 + $0x2b0] sm:$0xff]
    %v199 = vld [vmem:[#allocation4 + $0x2b8] sm:$0xff]
    %v200 = vld [vmem:[#allocation4 + $0x2c0] sm:$0xff]
    %v201 = vld [vmem:[#allocation4 + $0x2c8] sm:$0xff]
    %v202 = vld [vmem:[#allocation4 + $0x2d0] sm:$0xff]
    %v203 = vld [vmem:[#allocation4 + $0x2d8] sm:$0xff]
    %v204 = vld [vmem:[#allocation4 + $0x2e0] sm:$0xff]
    %v205 = vld [vmem:[#allocation4 + $0x2e8] sm:$0xff]
    %v206 = vld [vmem:[#allocation4 + $0x2f0] sm:$0xff]
    %v207 = vld [vmem:[#allocation4 + $0x2f8] sm:$0xff]
    %v208 = vld [vmem:[#allocation4 + $0x300] sm:$0xff]
    %v209 = vld [vmem:[#allocation4 + $0x308] sm:$0xff]
    %v210 = vld [vmem:[#allocation4 + $0x310] sm:$0xff]
    %v211 = vld [vmem:[#allocation4 + $0x318] sm:$0xff]
    %v212 = vld [vmem:[#allocation4 + $0x320] sm:$0xff]
    %v213 = vld [vmem:[#allocation4 + $0x328] sm:$0xff]
    %v214 = vld [vmem:[#allocation4 + $0x330] sm:$0xff]
    %v215 = vld [vmem:[#allocation4 + $0x338] sm:$0xff]
    %v216 = vld [vmem:[#allocation4 + $0x340] sm:$0xff]
    %v217 = vld [vmem:[#allocation4 + $0x348] sm:$0xff]
    %v218 = vld [vmem:[#allocation4 + $0x350] sm:$0xff]
    %v219 = vld [vmem:[#allocation4 + $0x358] sm:$0xff]
    %v220 = vld [vmem:[#allocation4 + $0x360] sm:$0xff]
    %v221 = vld [vmem:[#allocation4 + $0x368] sm:$0xff]
    %v222 = vld [vmem:[#allocation4 + $0x370] sm:$0xff]
    %v223 = vld [vmem:[#allocation4 + $0x378] sm:$0xff]
    %v224 = vld [vmem:[#allocation4 + $0x380] sm:$0xff]
    %v225 = vld [vmem:[#allocation4 + $0x388] sm:$0xff]
    %v226 = vld [vmem:[#allocation4 + $0x390] sm:$0xff]
    %v227 = vld [vmem:[#allocation4 + $0x398] sm:$0xff]
    %v228 = vld [vmem:[#allocation4 + $0x3a0] sm:$0xff]
    %v229 = vld [vmem:[#allocation4 + $0x3a8] sm:$0xff]
    %v230 = vld [vmem:[#allocation4 + $0x3b0] sm:$0xff]
    %v231 = vld [vmem:[#allocation4 + $0x3b8] sm:$0xff]
    %v232 = vld [vmem:[#allocation4 + $0x3c0] sm:$0xff]
    %v233 = vld [vmem:[#allocation4 + $0x3c8] sm:$0xff]
    %v234 = vld [vmem:[#allocation4 + $0x3d0] sm:$0xff]
    %v235 = vld [vmem:[#allocation4 + $0x3d8] sm:$0xff]
    %v236 = vld [vmem:[#allocation4 + $0x3e0] sm:$0xff]
    %v237 = vld [vmem:[#allocation4 + $0x3e8] sm:$0xff]
    %v238 = vld [vmem:[#allocation4 + $0x3f0] sm:$0xff]
    %v239 = vld [vmem:[#allocation4 + $0x3f8] sm:$0xff]
    %v240 = vld [vmem:[#allocation4 + $0x400] sm:$0xff]
    %v241 = vld [vmem:[#allocation4 + $0x408] sm:$0xff]
    %v242 = vld [vmem:[#allocation4 + $0x410] sm:$0xff]
    %v243 = vld [vmem:[#allocation4 + $0x418] sm:$0xff]
    %v244 = vld [vmem:[#allocation4 + $0x420] sm:$0xff]
    %v245 = vld [vmem:[#allocation4 + $0x428] sm:$0xff]
    %v246 = vld [vmem:[#allocation4 + $0x430] sm:$0xff]
    %v247 = vld [vmem:[#allocation4 + $0x438] sm:$0xff]
    %v248 = vld [vmem:[#allocation4 + $0x440] sm:$0xff]
    %v249 = vld [vmem:[#allocation4 + $0x448] sm:$0xff]
    %v250 = vld [vmem:[#allocation4 + $0x450] sm:$0xff]
    %v251 = vld [vmem:[#allocation4 + $0x458] sm:$0xff]
    %v252 = vld [vmem:[#allocation4 + $0x460] sm:$0xff]
    %v253 = vld [vmem:[#allocation4 + $0x468] sm:$0xff]
    %v254 = vld [vmem:[#allocation4 + $0x470] sm:$0xff]
    %v255 = vld [vmem:[#allocation4 + $0x478] sm:$0xff]
    %v256 = vld [vmem:[#allocation4 + $0x480] sm:$0xff]
    %v257 = vld [vmem:[#allocation4 + $0x488] sm:$0xff]
    %v258 = vld [vmem:[#allocation4 + $0x490] sm:$0xff]
    %v259 = vld [vmem:[#allocation4 + $0x498] sm:$0xff]
    %v260 = vld [vmem:[#allocation4 + $0x4a0] sm:$0xff]
    %v261 = vld [vmem:[#allocation4 + $0x4a8] sm:$0xff]
    %v262 = vld [vmem:[#allocation4 + $0x4b0] sm:$0xff]
    %v263 = vld [vmem:[#allocation4 + $0x4b8] sm:$0xff]
    %v264 = vld [vmem:[#allocation4 + $0x4c0] sm:$0xff]
    %v265 = vld [vmem:[#allocation4 + $0x4c8] sm:$0xff]
    %v266 = vld [vmem:[#allocation4 + $0x4d0] sm:$0xff]
    %v267 = vld [vmem:[#allocation4 + $0x4d8] sm:$0xff]
    %v268 = vld [vmem:[#allocation4 + $0x4e0] sm:$0xff]
    %v269 = vld [vmem:[#allocation4 + $0x4e8] sm:$0xff]
    %v270 = vld [vmem:[#allocation4 + $0x4f0] sm:$0xff]
    %v271 = vld [vmem:[#allocation4 + $0x4f8] sm:$0xff]
    %v272 = vld [vmem:[#allocation4 + $0x500] sm:$0xff]
    %v273 = vld [vmem:[#allocation4 + $0x508] sm:$0xff]
    %v274 = vld [vmem:[#allocation4 + $0x510] sm:$0xff]
    %v275 = vld [vmem:[#allocation4 + $0x518] sm:$0xff]
    %v276 = vld [vmem:[#allocation4 + $0x520] sm:$0xff]
    %v277 = vld [vmem:[#allocation4 + $0x528] sm:$0xff]
    %v278 = vld [vmem:[#allocation4 + $0x530] sm:$0xff]
    %v279 = vld [vmem:[#allocation4 + $0x538] sm:$0xff]
    %v280 = vld [vmem:[#allocation4 + $0x540] sm:$0xff]
    %v281 = vld [vmem:[#allocation4 + $0x548] sm:$0xff]
    %v282 = vld [vmem:[#allocation4 + $0x550] sm:$0xff]
    %v283 = vld [vmem:[#allocation4 + $0x558] sm:$0xff]
    %v284 = vld [vmem:[#allocation4 + $0x560] sm:$0xff]
    %v285 = vld [vmem:[#allocation4 + $0x568] sm:$0xff]
    %v286 = vld [vmem:[#allocation4 + $0x570] sm:$0xff]
    %v287 = vld [vmem:[#allocation4 + $0x578] sm:$0xff]
    %v288 = vld [vmem:[#allocation4 + $0x580] sm:$0xff]
    %v289 = vld [vmem:[#allocation4 + $0x588] sm:$0xff]
    %v290 = vld [vmem:[#allocation4 + $0x590] sm:$0xff]
    %v291 = vld [vmem:[#allocation4 + $0x598] sm:$0xff]
    %v292 = vld [vmem:[#allocation4 + $0x5a0] sm:$0xff]
    %v293 = vld [vmem:[#allocation4 + $0x5a8] sm:$0xff]
    %v294 = vld [vmem:[#allocation4 + $0x5b0] sm:$0xff]
    %v295 = vld [vmem:[#allocation4 + $0x5b8] sm:$0xff]
    %v296 = vld [vmem:[#allocation4 + $0x5c0] sm:$0xff]
    %v297 = vld [vmem:[#allocation4 + $0x5c8] sm:$0xff]
    %v298 = vld [vmem:[#allocation4 + $0x5d0] sm:$0xff]
    %v299 = vld [vmem:[#allocation4 + $0x5d8] sm:$0xff]
    %v300 = vld [vmem:[#allocation4 + $0x5e0] sm:$0xff]
    %v301 = vld [vmem:[#allocation4 + $0x5e8] sm:$0xff]
    %v302 = vld [vmem:[#allocation4 + $0x5f0] sm:$0xff]
    %v303 = vld [vmem:[#allocation4 + $0x5f8] sm:$0xff]
    %v304 = vld [vmem:[#allocation4 + $0x600] sm:$0xff]
    %v305 = vld [vmem:[#allocation4 + $0x608] sm:$0xff]
    %v306 = vld [vmem:[#allocation4 + $0x610] sm:$0xff]
    %v307 = vld [vmem:[#allocation4 + $0x618] sm:$0xff]
    %v308 = vld [vmem:[#allocation4 + $0x620] sm:$0xff]
    %v309 = vld [vmem:[#allocation4 + $0x628] sm:$0xff]
    %v310 = vld [vmem:[#allocation4 + $0x630] sm:$0xff]
    %v311 = vld [vmem:[#allocation4 + $0x638] sm:$0xff]
    %v312 = vld [vmem:[#allocation4 + $0x640] sm:$0xff]
    %v313 = vld [vmem:[#allocation4 + $0x648] sm:$0xff]
    %v314 = vld [vmem:[#allocation4 + $0x650] sm:$0xff]
    %v315 = vld [vmem:[#allocation4 + $0x658] sm:$0xff]
    %v316 = vld [vmem:[#allocation4 + $0x660] sm:$0xff]
    %v317 = vld [vmem:[#allocation4 + $0x668] sm:$0xff]
    %v318 = vld [vmem:[#allocation4 + $0x670] sm:$0xff]
    %v319 = vld [vmem:[#allocation4 + $0x678] sm:$0xff]
    %v320 = vld [vmem:[#allocation4 + $0x680] sm:$0xff]
    %v321 = vld [vmem:[#allocation4 + $0x688] sm:$0xff]
    %v322 = vld [vmem:[#allocation4 + $0x690] sm:$0xff]
    %v323 = vld [vmem:[#allocation4 + $0x698] sm:$0xff]
    %v324 = vld [vmem:[#allocation4 + $0x6a0] sm:$0xff]
    %v325 = vld [vmem:[#allocation4 + $0x6a8] sm:$0xff]
    %v326 = vld [vmem:[#allocation4 + $0x6b0] sm:$0xff]
    %v327 = vld [vmem:[#allocation4 + $0x6b8] sm:$0xff]
    %v328 = vld [vmem:[#allocation4 + $0x6c0] sm:$0xff]
    %v329 = vld [vmem:[#allocation4 + $0x6c8] sm:$0xff]
    %v330 = vld [vmem:[#allocation4 + $0x6d0] sm:$0xff]
    %v331 = vld [vmem:[#allocation4 + $0x6d8] sm:$0xff]
    %v332 = vld [vmem:[#allocation4 + $0x6e0] sm:$0xff]
    %v333 = vld [vmem:[#allocation4 + $0x6e8] sm:$0xff]
    %v334 = vld [vmem:[#allocation4 + $0x6f0] sm:$0xff]
    %v335 = vld [vmem:[#allocation4 + $0x6f8] sm:$0xff]
    %v336 = vld [vmem:[#allocation4 + $0x700] sm:$0xff]
    %v337 = vld [vmem:[#allocation4 + $0x708] sm:$0xff]
    %v338 = vld [vmem:[#allocation4 + $0x710] sm:$0xff]
    %v339 = vld [vmem:[#allocation4 + $0x718] sm:$0xff]
    %v340 = vld [vmem:[#allocation4 + $0x720] sm:$0xff]
    %v341 = vld [vmem:[#allocation4 + $0x728] sm:$0xff]
    %v342 = vld [vmem:[#allocation4 + $0x730] sm:$0xff]
    %v343 = vld [vmem:[#allocation4 + $0x738] sm:$0xff]
    %v344 = vld [vmem:[#allocation4 + $0x740] sm:$0xff]
    %v345 = vld [vmem:[#allocation4 + $0x748] sm:$0xff]
    %v346 = vld [vmem:[#allocation4 + $0x750] sm:$0xff]
    %v347 = vld [vmem:[#allocation4 + $0x758] sm:$0xff]
    %v348 = vld [vmem:[#allocation4 + $0x760] sm:$0xff]
    %v349 = vld [vmem:[#allocation4 + $0x768] sm:$0xff]
    %v350 = vld [vmem:[#allocation4 + $0x770] sm:$0xff]
    %v351 = vld [vmem:[#allocation4 + $0x778] sm:$0xff]
    %v352 = vld [vmem:[#allocation4 + $0x780] sm:$0xff]
    %v353 = vld [vmem:[#allocation4 + $0x788] sm:$0xff]
    %v354 = vld [vmem:[#allocation4 + $0x790] sm:$0xff]
    %v355 = vld [vmem:[#allocation4 + $0x798] sm:$0xff]
    %v356 = vld [vmem:[#allocation4 + $0x7a0] sm:$0xff]
    %v357 = vld [vmem:[#allocation4 + $0x7a8] sm:$0xff]
    %v358 = vld [vmem:[#allocation4 + $0x7b0] sm:$0xff]
    %v359 = vld [vmem:[#allocation4 + $0x7b8] sm:$0xff]
    %v360 = vld [vmem:[#allocation4 + $0x7c0] sm:$0xff]
    %v361 = vld [vmem:[#allocation4 + $0x7c8] sm:$0xff]
    %v362 = vld [vmem:[#allocation4 + $0x7d0] sm:$0xff]
    %v363 = vld [vmem:[#allocation4 + $0x7d8] sm:$0xff]
    %v364 = vld [vmem:[#allocation4 + $0x7e0] sm:$0xff]
    %v365 = vld [vmem:[#allocation4 + $0x7e8] sm:$0xff]
    %v366 = vld [vmem:[#allocation4 + $0x7f0] sm:$0xff]
    %v367 = vld [vmem:[#allocation4 + $0x7f8] sm:$0xff]
    %v368 = vld [vmem:[%s2] sm:$0xf]
    %v370 = vlaneseq
    %v371 = vshrl.u32 %v370, 7
    %v372 = vsub.s32 0, %v371
    %v373 = vrot.slane %v368, %v372
    %v374 = vlaneseq
    %v375 = vshrl.u32 %v374, 7
    %v376 = vsub.s32 1, %v375
    %v377 = vrot.slane %v368, %v376
    %v378 = vlaneseq
    %v379 = vshrl.u32 %v378, 7
    %v380 = vsub.s32 2, %v379
    %v381 = vrot.slane %v368, %v380
    %v382 = vlaneseq
    %v383 = vshrl.u32 %v382, 7
    %v384 = vsub.s32 3, %v383
    %v385 = vrot.slane %v368, %v384
    %v646 = vunpack.c.l.b16 %v112
    %v647 = vunpack.c.h.b16 %v112
    %v648 = vunpack.c.l.b16 %v113
    %v649 = vunpack.c.h.b16 %v113
    %v650 = vunpack.c.l.b16 %v114
    %v651 = vunpack.c.h.b16 %v114
    %v652 = vunpack.c.l.b16 %v115
    %v653 = vunpack.c.h.b16 %v115
    %v654 = vunpack.c.l.b16 %v116
    %v655 = vunpack.c.h.b16 %v116
    %v656 = vunpack.c.l.b16 %v117
    %v657 = vunpack.c.h.b16 %v117
    %v658 = vunpack.c.l.b16 %v118
    %v659 = vunpack.c.h.b16 %v118
    %v660 = vunpack.c.l.b16 %v119
    %v661 = vunpack.c.h.b16 %v119
    %v662 = vunpack.c.l.b16 %v120
    %v663 = vunpack.c.h.b16 %v120
    %v664 = vunpack.c.l.b16 %v121
    %v665 = vunpack.c.h.b16 %v121
    %v666 = vunpack.c.l.b16 %v122
    %v667 = vunpack.c.h.b16 %v122
    %v668 = vunpack.c.l.b16 %v123
    %v669 = vunpack.c.h.b16 %v123
    %v670 = vunpack.c.l.b16 %v124
    %v671 = vunpack.c.h.b16 %v124
    %v672 = vunpack.c.l.b16 %v125
    %v673 = vunpack.c.h.b16 %v125
    %v674 = vunpack.c.l.b16 %v126
    %v675 = vunpack.c.h.b16 %v126
    %v676 = vunpack.c.l.b16 %v127
    %v677 = vunpack.c.h.b16 %v127
    %v678 = vunpack.c.l.b16 %v128
    %v679 = vunpack.c.h.b16 %v128
    %v680 = vunpack.c.l.b16 %v129
    %v681 = vunpack.c.h.b16 %v129
    %v682 = vunpack.c.l.b16 %v130
    %v683 = vunpack.c.h.b16 %v130
    %v684 = vunpack.c.l.b16 %v131
    %v685 = vunpack.c.h.b16 %v131
    %v686 = vunpack.c.l.b16 %v132
    %v687 = vunpack.c.h.b16 %v132
    %v688 = vunpack.c.l.b16 %v133
    %v689 = vunpack.c.h.b16 %v133
    %v690 = vunpack.c.l.b16 %v134
    %v691 = vunpack.c.h.b16 %v134
    %v692 = vunpack.c.l.b16 %v135
    %v693 = vunpack.c.h.b16 %v135
    %v694 = vunpack.c.l.b16 %v136
    %v695 = vunpack.c.h.b16 %v136
    %v696 = vunpack.c.l.b16 %v137
    %v697 = vunpack.c.h.b16 %v137
    %v698 = vunpack.c.l.b16 %v138
    %v699 = vunpack.c.h.b16 %v138
    %v700 = vunpack.c.l.b16 %v139
    %v701 = vunpack.c.h.b16 %v139
    %v702 = vunpack.c.l.b16 %v140
    %v703 = vunpack.c.h.b16 %v140
    %v704 = vunpack.c.l.b16 %v141
    %v705 = vunpack.c.h.b16 %v141
    %v706 = vunpack.c.l.b16 %v142
    %v707 = vunpack.c.h.b16 %v142
    %v708 = vunpack.c.l.b16 %v143
    %v709 = vunpack.c.h.b16 %v143
    %v710 = vunpack.c.l.b16 %v144
    %v711 = vunpack.c.h.b16 %v144
    %v712 = vunpack.c.l.b16 %v145
    %v713 = vunpack.c.h.b16 %v145
    %v714 = vunpack.c.l.b16 %v146
    %v715 = vunpack.c.h.b16 %v146
    %v716 = vunpack.c.l.b16 %v147
    %v717 = vunpack.c.h.b16 %v147
    %v718 = vunpack.c.l.b16 %v148
    %v719 = vunpack.c.h.b16 %v148
    %v720 = vunpack.c.l.b16 %v149
    %v721 = vunpack.c.h.b16 %v149
    %v722 = vunpack.c.l.b16 %v150
    %v723 = vunpack.c.h.b16 %v150
    %v724 = vunpack.c.l.b16 %v151
    %v725 = vunpack.c.h.b16 %v151
    %v726 = vunpack.c.l.b16 %v152
    %v727 = vunpack.c.h.b16 %v152
    %v728 = vunpack.c.l.b16 %v153
    %v729 = vunpack.c.h.b16 %v153
    %v730 = vunpack.c.l.b16 %v154
    %v731 = vunpack.c.h.b16 %v154
    %v732 = vunpack.c.l.b16 %v155
    %v733 = vunpack.c.h.b16 %v155
    %v734 = vunpack.c.l.b16 %v156
    %v735 = vunpack.c.h.b16 %v156
    %v736 = vunpack.c.l.b16 %v157
    %v737 = vunpack.c.h.b16 %v157
    %v738 = vunpack.c.l.b16 %v158
    %v739 = vunpack.c.h.b16 %v158
    %v740 = vunpack.c.l.b16 %v159
    %v741 = vunpack.c.h.b16 %v159
    %v742 = vunpack.c.l.b16 %v160
    %v743 = vunpack.c.h.b16 %v160
    %v744 = vunpack.c.l.b16 %v161
    %v745 = vunpack.c.h.b16 %v161
    %v746 = vunpack.c.l.b16 %v162
    %v747 = vunpack.c.h.b16 %v162
    %v748 = vunpack.c.l.b16 %v163
    %v749 = vunpack.c.h.b16 %v163
    %v750 = vunpack.c.l.b16 %v164
    %v751 = vunpack.c.h.b16 %v164
    %v752 = vunpack.c.l.b16 %v165
    %v753 = vunpack.c.h.b16 %v165
    %v754 = vunpack.c.l.b16 %v166
    %v755 = vunpack.c.h.b16 %v166
    %v756 = vunpack.c.l.b16 %v167
    %v757 = vunpack.c.h.b16 %v167
    %v758 = vunpack.c.l.b16 %v168
    %v759 = vunpack.c.h.b16 %v168
    %v760 = vunpack.c.l.b16 %v169
    %v761 = vunpack.c.h.b16 %v169
    %v762 = vunpack.c.l.b16 %v170
    %v763 = vunpack.c.h.b16 %v170
    %v764 = vunpack.c.l.b16 %v171
    %v765 = vunpack.c.h.b16 %v171
    %v766 = vunpack.c.l.b16 %v172
    %v767 = vunpack.c.h.b16 %v172
    %v768 = vunpack.c.l.b16 %v173
    %v769 = vunpack.c.h.b16 %v173
    %v770 = vunpack.c.l.b16 %v174
    %v771 = vunpack.c.h.b16 %v174
    %v772 = vunpack.c.l.b16 %v175
    %v773 = vunpack.c.h.b16 %v175
    %v774 = vunpack.c.l.b16 %v176
    %v775 = vunpack.c.h.b16 %v176
    %v776 = vunpack.c.l.b16 %v177
    %v777 = vunpack.c.h.b16 %v177
    %v778 = vunpack.c.l.b16 %v178
    %v779 = vunpack.c.h.b16 %v178
    %v780 = vunpack.c.l.b16 %v179
    %v781 = vunpack.c.h.b16 %v179
    %v782 = vunpack.c.l.b16 %v180
    %v783 = vunpack.c.h.b16 %v180
    %v784 = vunpack.c.l.b16 %v181
    %v785 = vunpack.c.h.b16 %v181
    %v786 = vunpack.c.l.b16 %v182
    %v787 = vunpack.c.h.b16 %v182
    %v788 = vunpack.c.l.b16 %v183
    %v789 = vunpack.c.h.b16 %v183
    %v790 = vunpack.c.l.b16 %v184
    %v791 = vunpack.c.h.b16 %v184
    %v792 = vunpack.c.l.b16 %v185
    %v793 = vunpack.c.h.b16 %v185
    %v794 = vunpack.c.l.b16 %v186
    %v795 = vunpack.c.h.b16 %v186
    %v796 = vunpack.c.l.b16 %v187
    %v797 = vunpack.c.h.b16 %v187
    %v798 = vunpack.c.l.b16 %v188
    %v799 = vunpack.c.h.b16 %v188
    %v800 = vunpack.c.l.b16 %v189
    %v801 = vunpack.c.h.b16 %v189
    %v802 = vunpack.c.l.b16 %v190
    %v803 = vunpack.c.h.b16 %v190
    %v804 = vunpack.c.l.b16 %v191
    %v805 = vunpack.c.h.b16 %v191
    %v806 = vunpack.c.l.b16 %v192
    %v807 = vunpack.c.h.b16 %v192
    %v808 = vunpack.c.l.b16 %v193
    %v809 = vunpack.c.h.b16 %v193
    %v810 = vunpack.c.l.b16 %v194
    %v811 = vunpack.c.h.b16 %v194
    %v812 = vunpack.c.l.b16 %v195
    %v813 = vunpack.c.h.b16 %v195
    %v814 = vunpack.c.l.b16 %v196
    %v815 = vunpack.c.h.b16 %v196
    %v816 = vunpack.c.l.b16 %v197
    %v817 = vunpack.c.h.b16 %v197
    %v818 = vunpack.c.l.b16 %v198
    %v819 = vunpack.c.h.b16 %v198
    %v820 = vunpack.c.l.b16 %v199
    %v821 = vunpack.c.h.b16 %v199
    %v822 = vunpack.c.l.b16 %v200
    %v823 = vunpack.c.h.b16 %v200
    %v824 = vunpack.c.l.b16 %v201
    %v825 = vunpack.c.h.b16 %v201
    %v826 = vunpack.c.l.b16 %v202
    %v827 = vunpack.c.h.b16 %v202
    %v828 = vunpack.c.l.b16 %v203
    %v829 = vunpack.c.h.b16 %v203
    %v830 = vunpack.c.l.b16 %v204
    %v831 = vunpack.c.h.b16 %v204
    %v832 = vunpack.c.l.b16 %v205
    %v833 = vunpack.c.h.b16 %v205
    %v834 = vunpack.c.l.b16 %v206
    %v835 = vunpack.c.h.b16 %v206
    %v836 = vunpack.c.l.b16 %v207
    %v837 = vunpack.c.h.b16 %v207
    %v838 = vunpack.c.l.b16 %v208
    %v839 = vunpack.c.h.b16 %v208
    %v840 = vunpack.c.l.b16 %v209
    %v841 = vunpack.c.h.b16 %v209
    %v842 = vunpack.c.l.b16 %v210
    %v843 = vunpack.c.h.b16 %v210
    %v844 = vunpack.c.l.b16 %v211
    %v845 = vunpack.c.h.b16 %v211
    %v846 = vunpack.c.l.b16 %v212
    %v847 = vunpack.c.h.b16 %v212
    %v848 = vunpack.c.l.b16 %v213
    %v849 = vunpack.c.h.b16 %v213
    %v850 = vunpack.c.l.b16 %v214
    %v851 = vunpack.c.h.b16 %v214
    %v852 = vunpack.c.l.b16 %v215
    %v853 = vunpack.c.h.b16 %v215
    %v854 = vunpack.c.l.b16 %v216
    %v855 = vunpack.c.h.b16 %v216
    %v856 = vunpack.c.l.b16 %v217
    %v857 = vunpack.c.h.b16 %v217
    %v858 = vunpack.c.l.b16 %v218
    %v859 = vunpack.c.h.b16 %v218
    %v860 = vunpack.c.l.b16 %v219
    %v861 = vunpack.c.h.b16 %v219
    %v862 = vunpack.c.l.b16 %v220
    %v863 = vunpack.c.h.b16 %v220
    %v864 = vunpack.c.l.b16 %v221
    %v865 = vunpack.c.h.b16 %v221
    %v866 = vunpack.c.l.b16 %v222
    %v867 = vunpack.c.h.b16 %v222
    %v868 = vunpack.c.l.b16 %v223
    %v869 = vunpack.c.h.b16 %v223
    %v870 = vunpack.c.l.b16 %v224
    %v871 = vunpack.c.h.b16 %v224
    %v872 = vunpack.c.l.b16 %v225
    %v873 = vunpack.c.h.b16 %v225
    %v874 = vunpack.c.l.b16 %v226
    %v875 = vunpack.c.h.b16 %v226
    %v876 = vunpack.c.l.b16 %v227
    %v877 = vunpack.c.h.b16 %v227
    %v878 = vunpack.c.l.b16 %v228
    %v879 = vunpack.c.h.b16 %v228
    %v880 = vunpack.c.l.b16 %v229
    %v881 = vunpack.c.h.b16 %v229
    %v882 = vunpack.c.l.b16 %v230
    %v883 = vunpack.c.h.b16 %v230
    %v884 = vunpack.c.l.b16 %v231
    %v885 = vunpack.c.h.b16 %v231
    %v886 = vunpack.c.l.b16 %v232
    %v887 = vunpack.c.h.b16 %v232
    %v888 = vunpack.c.l.b16 %v233
    %v889 = vunpack.c.h.b16 %v233
    %v890 = vunpack.c.l.b16 %v234
    %v891 = vunpack.c.h.b16 %v234
    %v892 = vunpack.c.l.b16 %v235
    %v893 = vunpack.c.h.b16 %v235
    %v894 = vunpack.c.l.b16 %v236
    %v895 = vunpack.c.h.b16 %v236
    %v896 = vunpack.c.l.b16 %v237
    %v897 = vunpack.c.h.b16 %v237
    %v898 = vunpack.c.l.b16 %v238
    %v899 = vunpack.c.h.b16 %v238
    %v900 = vunpack.c.l.b16 %v239
    %v901 = vunpack.c.h.b16 %v239
    %v902 = vunpack.c.l.b16 %v240
    %v903 = vunpack.c.h.b16 %v240
    %v904 = vunpack.c.l.b16 %v241
    %v905 = vunpack.c.h.b16 %v241
    %v906 = vunpack.c.l.b16 %v242
    %v907 = vunpack.c.h.b16 %v242
    %v908 = vunpack.c.l.b16 %v243
    %v909 = vunpack.c.h.b16 %v243
    %v910 = vunpack.c.l.b16 %v244
    %v911 = vunpack.c.h.b16 %v244
    %v912 = vunpack.c.l.b16 %v245
    %v913 = vunpack.c.h.b16 %v245
    %v914 = vunpack.c.l.b16 %v246
    %v915 = vunpack.c.h.b16 %v246
    %v916 = vunpack.c.l.b16 %v247
    %v917 = vunpack.c.h.b16 %v247
    %v918 = vunpack.c.l.b16 %v248
    %v919 = vunpack.c.h.b16 %v248
    %v920 = vunpack.c.l.b16 %v249
    %v921 = vunpack.c.h.b16 %v249
    %v922 = vunpack.c.l.b16 %v250
    %v923 = vunpack.c.h.b16 %v250
    %v924 = vunpack.c.l.b16 %v251
    %v925 = vunpack.c.h.b16 %v251
    %v926 = vunpack.c.l.b16 %v252
    %v927 = vunpack.c.h.b16 %v252
    %v928 = vunpack.c.l.b16 %v253
    %v929 = vunpack.c.h.b16 %v253
    %v930 = vunpack.c.l.b16 %v254
    %v931 = vunpack.c.h.b16 %v254
    %v932 = vunpack.c.l.b16 %v255
    %v933 = vunpack.c.h.b16 %v255
    %v934 = vunpack.c.l.b16 %v256
    %v935 = vunpack.c.h.b16 %v256
    %v936 = vunpack.c.l.b16 %v257
    %v937 = vunpack.c.h.b16 %v257
    %v938 = vunpack.c.l.b16 %v258
    %v939 = vunpack.c.h.b16 %v258
    %v940 = vunpack.c.l.b16 %v259
    %v941 = vunpack.c.h.b16 %v259
    %v942 = vunpack.c.l.b16 %v260
    %v943 = vunpack.c.h.b16 %v260
    %v944 = vunpack.c.l.b16 %v261
    %v945 = vunpack.c.h.b16 %v261
    %v946 = vunpack.c.l.b16 %v262
    %v947 = vunpack.c.h.b16 %v262
    %v948 = vunpack.c.l.b16 %v263
    %v949 = vunpack.c.h.b16 %v263
    %v950 = vunpack.c.l.b16 %v264
    %v951 = vunpack.c.h.b16 %v264
    %v952 = vunpack.c.l.b16 %v265
    %v953 = vunpack.c.h.b16 %v265
    %v954 = vunpack.c.l.b16 %v266
    %v955 = vunpack.c.h.b16 %v266
    %v956 = vunpack.c.l.b16 %v267
    %v957 = vunpack.c.h.b16 %v267
    %v958 = vunpack.c.l.b16 %v268
    %v959 = vunpack.c.h.b16 %v268
    %v960 = vunpack.c.l.b16 %v269
    %v961 = vunpack.c.h.b16 %v269
    %v962 = vunpack.c.l.b16 %v270
    %v963 = vunpack.c.h.b16 %v270
    %v964 = vunpack.c.l.b16 %v271
    %v965 = vunpack.c.h.b16 %v271
    %v966 = vunpack.c.l.b16 %v272
    %v967 = vunpack.c.h.b16 %v272
    %v968 = vunpack.c.l.b16 %v273
    %v969 = vunpack.c.h.b16 %v273
    %v970 = vunpack.c.l.b16 %v274
    %v971 = vunpack.c.h.b16 %v274
    %v972 = vunpack.c.l.b16 %v275
    %v973 = vunpack.c.h.b16 %v275
    %v974 = vunpack.c.l.b16 %v276
    %v975 = vunpack.c.h.b16 %v276
    %v976 = vunpack.c.l.b16 %v277
    %v977 = vunpack.c.h.b16 %v277
    %v978 = vunpack.c.l.b16 %v278
    %v979 = vunpack.c.h.b16 %v278
    %v980 = vunpack.c.l.b16 %v279
    %v981 = vunpack.c.h.b16 %v279
    %v982 = vunpack.c.l.b16 %v280
    %v983 = vunpack.c.h.b16 %v280
    %v984 = vunpack.c.l.b16 %v281
    %v985 = vunpack.c.h.b16 %v281
    %v986 = vunpack.c.l.b16 %v282
    %v987 = vunpack.c.h.b16 %v282
    %v988 = vunpack.c.l.b16 %v283
    %v989 = vunpack.c.h.b16 %v283
    %v990 = vunpack.c.l.b16 %v284
    %v991 = vunpack.c.h.b16 %v284
    %v992 = vunpack.c.l.b16 %v285
    %v993 = vunpack.c.h.b16 %v285
    %v994 = vunpack.c.l.b16 %v286
    %v995 = vunpack.c.h.b16 %v286
    %v996 = vunpack.c.l.b16 %v287
    %v997 = vunpack.c.h.b16 %v287
    %v998 = vunpack.c.l.b16 %v288
    %v999 = vunpack.c.h.b16 %v288
    %v1000 = vunpack.c.l.b16 %v289
    %v1001 = vunpack.c.h.b16 %v289
    %v1002 = vunpack.c.l.b16 %v290
    %v1003 = vunpack.c.h.b16 %v290
    %v1004 = vunpack.c.l.b16 %v291
    %v1005 = vunpack.c.h.b16 %v291
    %v1006 = vunpack.c.l.b16 %v292
    %v1007 = vunpack.c.h.b16 %v292
    %v1008 = vunpack.c.l.b16 %v293
    %v1009 = vunpack.c.h.b16 %v293
    %v1010 = vunpack.c.l.b16 %v294
    %v1011 = vunpack.c.h.b16 %v294
    %v1012 = vunpack.c.l.b16 %v295
    %v1013 = vunpack.c.h.b16 %v295
    %v1014 = vunpack.c.l.b16 %v296
    %v1015 = vunpack.c.h.b16 %v296
    %v1016 = vunpack.c.l.b16 %v297
    %v1017 = vunpack.c.h.b16 %v297
    %v1018 = vunpack.c.l.b16 %v298
    %v1019 = vunpack.c.h.b16 %v298
    %v1020 = vunpack.c.l.b16 %v299
    %v1021 = vunpack.c.h.b16 %v299
    %v1022 = vunpack.c.l.b16 %v300
    %v1023 = vunpack.c.h.b16 %v300
    %v1024 = vunpack.c.l.b16 %v301
    %v1025 = vunpack.c.h.b16 %v301
    %v1026 = vunpack.c.l.b16 %v302
    %v1027 = vunpack.c.h.b16 %v302
    %v1028 = vunpack.c.l.b16 %v303
    %v1029 = vunpack.c.h.b16 %v303
    %v1030 = vunpack.c.l.b16 %v304
    %v1031 = vunpack.c.h.b16 %v304
    %v1032 = vunpack.c.l.b16 %v305
    %v1033 = vunpack.c.h.b16 %v305
    %v1034 = vunpack.c.l.b16 %v306
    %v1035 = vunpack.c.h.b16 %v306
    %v1036 = vunpack.c.l.b16 %v307
    %v1037 = vunpack.c.h.b16 %v307
    %v1038 = vunpack.c.l.b16 %v308
    %v1039 = vunpack.c.h.b16 %v308
    %v1040 = vunpack.c.l.b16 %v309
    %v1041 = vunpack.c.h.b16 %v309
    %v1042 = vunpack.c.l.b16 %v310
    %v1043 = vunpack.c.h.b16 %v310
    %v1044 = vunpack.c.l.b16 %v311
    %v1045 = vunpack.c.h.b16 %v311
    %v1046 = vunpack.c.l.b16 %v312
    %v1047 = vunpack.c.h.b16 %v312
    %v1048 = vunpack.c.l.b16 %v313
    %v1049 = vunpack.c.h.b16 %v313
    %v1050 = vunpack.c.l.b16 %v314
    %v1051 = vunpack.c.h.b16 %v314
    %v1052 = vunpack.c.l.b16 %v315
    %v1053 = vunpack.c.h.b16 %v315
    %v1054 = vunpack.c.l.b16 %v316
    %v1055 = vunpack.c.h.b16 %v316
    %v1056 = vunpack.c.l.b16 %v317
    %v1057 = vunpack.c.h.b16 %v317
    %v1058 = vunpack.c.l.b16 %v318
    %v1059 = vunpack.c.h.b16 %v318
    %v1060 = vunpack.c.l.b16 %v319
    %v1061 = vunpack.c.h.b16 %v319
    %v1062 = vunpack.c.l.b16 %v320
    %v1063 = vunpack.c.h.b16 %v320
    %v1064 = vunpack.c.l.b16 %v321
    %v1065 = vunpack.c.h.b16 %v321
    %v1066 = vunpack.c.l.b16 %v322
    %v1067 = vunpack.c.h.b16 %v322
    %v1068 = vunpack.c.l.b16 %v323
    %v1069 = vunpack.c.h.b16 %v323
    %v1070 = vunpack.c.l.b16 %v324
    %v1071 = vunpack.c.h.b16 %v324
    %v1072 = vunpack.c.l.b16 %v325
    %v1073 = vunpack.c.h.b16 %v325
    %v1074 = vunpack.c.l.b16 %v326
    %v1075 = vunpack.c.h.b16 %v326
    %v1076 = vunpack.c.l.b16 %v327
    %v1077 = vunpack.c.h.b16 %v327
    %v1078 = vunpack.c.l.b16 %v328
    %v1079 = vunpack.c.h.b16 %v328
    %v1080 = vunpack.c.l.b16 %v329
    %v1081 = vunpack.c.h.b16 %v329
    %v1082 = vunpack.c.l.b16 %v330
    %v1083 = vunpack.c.h.b16 %v330
    %v1084 = vunpack.c.l.b16 %v331
    %v1085 = vunpack.c.h.b16 %v331
    %v1086 = vunpack.c.l.b16 %v332
    %v1087 = vunpack.c.h.b16 %v332
    %v1088 = vunpack.c.l.b16 %v333
    %v1089 = vunpack.c.h.b16 %v333
    %v1090 = vunpack.c.l.b16 %v334
    %v1091 = vunpack.c.h.b16 %v334
    %v1092 = vunpack.c.l.b16 %v335
    %v1093 = vunpack.c.h.b16 %v335
    %v1094 = vunpack.c.l.b16 %v336
    %v1095 = vunpack.c.h.b16 %v336
    %v1096 = vunpack.c.l.b16 %v337
    %v1097 = vunpack.c.h.b16 %v337
    %v1098 = vunpack.c.l.b16 %v338
    %v1099 = vunpack.c.h.b16 %v338
    %v1100 = vunpack.c.l.b16 %v339
    %v1101 = vunpack.c.h.b16 %v339
    %v1102 = vunpack.c.l.b16 %v340
    %v1103 = vunpack.c.h.b16 %v340
    %v1104 = vunpack.c.l.b16 %v341
    %v1105 = vunpack.c.h.b16 %v341
    %v1106 = vunpack.c.l.b16 %v342
    %v1107 = vunpack.c.h.b16 %v342
    %v1108 = vunpack.c.l.b16 %v343
    %v1109 = vunpack.c.h.b16 %v343
    %v1110 = vunpack.c.l.b16 %v344
    %v1111 = vunpack.c.h.b16 %v344
    %v1112 = vunpack.c.l.b16 %v345
    %v1113 = vunpack.c.h.b16 %v345
    %v1114 = vunpack.c.l.b16 %v346
    %v1115 = vunpack.c.h.b16 %v346
    %v1116 = vunpack.c.l.b16 %v347
    %v1117 = vunpack.c.h.b16 %v347
    %v1118 = vunpack.c.l.b16 %v348
    %v1119 = vunpack.c.h.b16 %v348
    %v1120 = vunpack.c.l.b16 %v349
    %v1121 = vunpack.c.h.b16 %v349
    %v1122 = vunpack.c.l.b16 %v350
    %v1123 = vunpack.c.h.b16 %v350
    %v1124 = vunpack.c.l.b16 %v351
    %v1125 = vunpack.c.h.b16 %v351
    %v1126 = vunpack.c.l.b16 %v352
    %v1127 = vunpack.c.h.b16 %v352
    %v1128 = vunpack.c.l.b16 %v353
    %v1129 = vunpack.c.h.b16 %v353
    %v1130 = vunpack.c.l.b16 %v354
    %v1131 = vunpack.c.h.b16 %v354
    %v1132 = vunpack.c.l.b16 %v355
    %v1133 = vunpack.c.h.b16 %v355
    %v1134 = vunpack.c.l.b16 %v356
    %v1135 = vunpack.c.h.b16 %v356
    %v1136 = vunpack.c.l.b16 %v357
    %v1137 = vunpack.c.h.b16 %v357
    %v1138 = vunpack.c.l.b16 %v358
    %v1139 = vunpack.c.h.b16 %v358
    %v1140 = vunpack.c.l.b16 %v359
    %v1141 = vunpack.c.h.b16 %v359
    %v1142 = vunpack.c.l.b16 %v360
    %v1143 = vunpack.c.h.b16 %v360
    %v1144 = vunpack.c.l.b16 %v361
    %v1145 = vunpack.c.h.b16 %v361
    %v1146 = vunpack.c.l.b16 %v362
    %v1147 = vunpack.c.h.b16 %v362
    %v1148 = vunpack.c.l.b16 %v363
    %v1149 = vunpack.c.h.b16 %v363
    %v1150 = vunpack.c.l.b16 %v364
    %v1151 = vunpack.c.h.b16 %v364
    %v1152 = vunpack.c.l.b16 %v365
    %v1153 = vunpack.c.h.b16 %v365
    %v1154 = vunpack.c.l.b16 %v366
    %v1155 = vunpack.c.h.b16 %v366
    %v1156 = vunpack.c.l.b16 %v367
    %v1157 = vunpack.c.h.b16 %v367
    %v1158 = vpack.c.b16 %v650, %v646
    %v1159 = vpack.c.b16 %v651, %v647
    %v1160 = vpack.c.b16 %v652, %v648
    %v1161 = vpack.c.b16 %v653, %v649
    %v1162 = vpack.c.b16 %v658, %v654
    %v1163 = vpack.c.b16 %v659, %v655
    %v1164 = vpack.c.b16 %v660, %v656
    %v1165 = vpack.c.b16 %v661, %v657
    %v1166 = vpack.c.b16 %v666, %v662
    %v1167 = vpack.c.b16 %v667, %v663
    %v1168 = vpack.c.b16 %v668, %v664
    %v1169 = vpack.c.b16 %v669, %v665
    %v1170 = vpack.c.b16 %v674, %v670
    %v1171 = vpack.c.b16 %v675, %v671
    %v1172 = vpack.c.b16 %v676, %v672
    %v1173 = vpack.c.b16 %v677, %v673
    %v1174 = vpack.c.b16 %v682, %v678
    %v1175 = vpack.c.b16 %v683, %v679
    %v1176 = vpack.c.b16 %v684, %v680
    %v1177 = vpack.c.b16 %v685, %v681
    %v1178 = vpack.c.b16 %v690, %v686
    %v1179 = vpack.c.b16 %v691, %v687
    %v1180 = vpack.c.b16 %v692, %v688
    %v1181 = vpack.c.b16 %v693, %v689
    %v1182 = vpack.c.b16 %v698, %v694
    %v1183 = vpack.c.b16 %v699, %v695
    %v1184 = vpack.c.b16 %v700, %v696
    %v1185 = vpack.c.b16 %v701, %v697
    %v1186 = vpack.c.b16 %v706, %v702
    %v1187 = vpack.c.b16 %v707, %v703
    %v1188 = vpack.c.b16 %v708, %v704
    %v1189 = vpack.c.b16 %v709, %v705
    %v1190 = vpack.c.b16 %v714, %v710
    %v1191 = vpack.c.b16 %v715, %v711
    %v1192 = vpack.c.b16 %v716, %v712
    %v1193 = vpack.c.b16 %v717, %v713
    %v1194 = vpack.c.b16 %v722, %v718
    %v1195 = vpack.c.b16 %v723, %v719
    %v1196 = vpack.c.b16 %v724, %v720
    %v1197 = vpack.c.b16 %v725, %v721
    %v1198 = vpack.c.b16 %v730, %v726
    %v1199 = vpack.c.b16 %v731, %v727
    %v1200 = vpack.c.b16 %v732, %v728
    %v1201 = vpack.c.b16 %v733, %v729
    %v1202 = vpack.c.b16 %v738, %v734
    %v1203 = vpack.c.b16 %v739, %v735
    %v1204 = vpack.c.b16 %v740, %v736
    %v1205 = vpack.c.b16 %v741, %v737
    %v1206 = vpack.c.b16 %v746, %v742
    %v1207 = vpack.c.b16 %v747, %v743
    %v1208 = vpack.c.b16 %v748, %v744
    %v1209 = vpack.c.b16 %v749, %v745
    %v1210 = vpack.c.b16 %v754, %v750
    %v1211 = vpack.c.b16 %v755, %v751
    %v1212 = vpack.c.b16 %v756, %v752
    %v1213 = vpack.c.b16 %v757, %v753
    %v1214 = vpack.c.b16 %v762, %v758
    %v1215 = vpack.c.b16 %v763, %v759
    %v1216 = vpack.c.b16 %v764, %v760
    %v1217 = vpack.c.b16 %v765, %v761
    %v1218 = vpack.c.b16 %v770, %v766
    %v1219 = vpack.c.b16 %v771, %v767
    %v1220 = vpack.c.b16 %v772, %v768
    %v1221 = vpack.c.b16 %v773, %v769
    %v1222 = vpack.c.b16 %v778, %v774
    %v1223 = vpack.c.b16 %v779, %v775
    %v1224 = vpack.c.b16 %v780, %v776
    %v1225 = vpack.c.b16 %v781, %v777
    %v1226 = vpack.c.b16 %v786, %v782
    %v1227 = vpack.c.b16 %v787, %v783
    %v1228 = vpack.c.b16 %v788, %v784
    %v1229 = vpack.c.b16 %v789, %v785
    %v1230 = vpack.c.b16 %v794, %v790
    %v1231 = vpack.c.b16 %v795, %v791
    %v1232 = vpack.c.b16 %v796, %v792
    %v1233 = vpack.c.b16 %v797, %v793
    %v1234 = vpack.c.b16 %v802, %v798
    %v1235 = vpack.c.b16 %v803, %v799
    %v1236 = vpack.c.b16 %v804, %v800
    %v1237 = vpack.c.b16 %v805, %v801
    %v1238 = vpack.c.b16 %v810, %v806
    %v1239 = vpack.c.b16 %v811, %v807
    %v1240 = vpack.c.b16 %v812, %v808
    %v1241 = vpack.c.b16 %v813, %v809
    %v1242 = vpack.c.b16 %v818, %v814
    %v1243 = vpack.c.b16 %v819, %v815
    %v1244 = vpack.c.b16 %v820, %v816
    %v1245 = vpack.c.b16 %v821, %v817
    %v1246 = vpack.c.b16 %v826, %v822
    %v1247 = vpack.c.b16 %v827, %v823
    %v1248 = vpack.c.b16 %v828, %v824
    %v1249 = vpack.c.b16 %v829, %v825
    %v1250 = vpack.c.b16 %v834, %v830
    %v1251 = vpack.c.b16 %v835, %v831
    %v1252 = vpack.c.b16 %v836, %v832
    %v1253 = vpack.c.b16 %v837, %v833
    %v1254 = vpack.c.b16 %v842, %v838
    %v1255 = vpack.c.b16 %v843, %v839
    %v1256 = vpack.c.b16 %v844, %v840
    %v1257 = vpack.c.b16 %v845, %v841
    %v1258 = vpack.c.b16 %v850, %v846
    %v1259 = vpack.c.b16 %v851, %v847
    %v1260 = vpack.c.b16 %v852, %v848
    %v1261 = vpack.c.b16 %v853, %v849
    %v1262 = vpack.c.b16 %v858, %v854
    %v1263 = vpack.c.b16 %v859, %v855
    %v1264 = vpack.c.b16 %v860, %v856
    %v1265 = vpack.c.b16 %v861, %v857
    %v1266 = vpack.c.b16 %v866, %v862
    %v1267 = vpack.c.b16 %v867, %v863
    %v1268 = vpack.c.b16 %v868, %v864
    %v1269 = vpack.c.b16 %v869, %v865
    %v1270 = vpack.c.b16 %v874, %v870
    %v1271 = vpack.c.b16 %v875, %v871
    %v1272 = vpack.c.b16 %v876, %v872
    %v1273 = vpack.c.b16 %v877, %v873
    %v1274 = vpack.c.b16 %v882, %v878
    %v1275 = vpack.c.b16 %v883, %v879
    %v1276 = vpack.c.b16 %v884, %v880
    %v1277 = vpack.c.b16 %v885, %v881
    %v1278 = vpack.c.b16 %v890, %v886
    %v1279 = vpack.c.b16 %v891, %v887
    %v1280 = vpack.c.b16 %v892, %v888
    %v1281 = vpack.c.b16 %v893, %v889
    %v1282 = vpack.c.b16 %v898, %v894
    %v1283 = vpack.c.b16 %v899, %v895
    %v1284 = vpack.c.b16 %v900, %v896
    %v1285 = vpack.c.b16 %v901, %v897
    %v1286 = vpack.c.b16 %v906, %v902
    %v1287 = vpack.c.b16 %v907, %v903
    %v1288 = vpack.c.b16 %v908, %v904
    %v1289 = vpack.c.b16 %v909, %v905
    %v1290 = vpack.c.b16 %v914, %v910
    %v1291 = vpack.c.b16 %v915, %v911
    %v1292 = vpack.c.b16 %v916, %v912
    %v1293 = vpack.c.b16 %v917, %v913
    %v1294 = vpack.c.b16 %v922, %v918
    %v1295 = vpack.c.b16 %v923, %v919
    %v1296 = vpack.c.b16 %v924, %v920
    %v1297 = vpack.c.b16 %v925, %v921
    %v1298 = vpack.c.b16 %v930, %v926
    %v1299 = vpack.c.b16 %v931, %v927
    %v1300 = vpack.c.b16 %v932, %v928
    %v1301 = vpack.c.b16 %v933, %v929
    %v1302 = vpack.c.b16 %v938, %v934
    %v1303 = vpack.c.b16 %v939, %v935
    %v1304 = vpack.c.b16 %v940, %v936
    %v1305 = vpack.c.b16 %v941, %v937
    %v1306 = vpack.c.b16 %v946, %v942
    %v1307 = vpack.c.b16 %v947, %v943
    %v1308 = vpack.c.b16 %v948, %v944
    %v1309 = vpack.c.b16 %v949, %v945
    %v1310 = vpack.c.b16 %v954, %v950
    %v1311 = vpack.c.b16 %v955, %v951
    %v1312 = vpack.c.b16 %v956, %v952
    %v1313 = vpack.c.b16 %v957, %v953
    %v1314 = vpack.c.b16 %v962, %v958
    %v1315 = vpack.c.b16 %v963, %v959
    %v1316 = vpack.c.b16 %v964, %v960
    %v1317 = vpack.c.b16 %v965, %v961
    %v1318 = vpack.c.b16 %v970, %v966
    %v1319 = vpack.c.b16 %v971, %v967
    %v1320 = vpack.c.b16 %v972, %v968
    %v1321 = vpack.c.b16 %v973, %v969
    %v1322 = vpack.c.b16 %v978, %v974
    %v1323 = vpack.c.b16 %v979, %v975
    %v1324 = vpack.c.b16 %v980, %v976
    %v1325 = vpack.c.b16 %v981, %v977
    %v1326 = vpack.c.b16 %v986, %v982
    %v1327 = vpack.c.b16 %v987, %v983
    %v1328 = vpack.c.b16 %v988, %v984
    %v1329 = vpack.c.b16 %v989, %v985
    %v1330 = vpack.c.b16 %v994, %v990
    %v1331 = vpack.c.b16 %v995, %v991
    %v1332 = vpack.c.b16 %v996, %v992
    %v1333 = vpack.c.b16 %v997, %v993
    %v1334 = vpack.c.b16 %v1002, %v998
    %v1335 = vpack.c.b16 %v1003, %v999
    %v1336 = vpack.c.b16 %v1004, %v1000
    %v1337 = vpack.c.b16 %v1005, %v1001
    %v1338 = vpack.c.b16 %v1010, %v1006
    %v1339 = vpack.c.b16 %v1011, %v1007
    %v1340 = vpack.c.b16 %v1012, %v1008
    %v1341 = vpack.c.b16 %v1013, %v1009
    %v1342 = vpack.c.b16 %v1018, %v1014
    %v1343 = vpack.c.b16 %v1019, %v1015
    %v1344 = vpack.c.b16 %v1020, %v1016
    %v1345 = vpack.c.b16 %v1021, %v1017
    %v1346 = vpack.c.b16 %v1026, %v1022
    %v1347 = vpack.c.b16 %v1027, %v1023
    %v1348 = vpack.c.b16 %v1028, %v1024
    %v1349 = vpack.c.b16 %v1029, %v1025
    %v1350 = vpack.c.b16 %v1034, %v1030
    %v1351 = vpack.c.b16 %v1035, %v1031
    %v1352 = vpack.c.b16 %v1036, %v1032
    %v1353 = vpack.c.b16 %v1037, %v1033
    %v1354 = vpack.c.b16 %v1042, %v1038
    %v1355 = vpack.c.b16 %v1043, %v1039
    %v1356 = vpack.c.b16 %v1044, %v1040
    %v1357 = vpack.c.b16 %v1045, %v1041
    %v1358 = vpack.c.b16 %v1050, %v1046
    %v1359 = vpack.c.b16 %v1051, %v1047
    %v1360 = vpack.c.b16 %v1052, %v1048
    %v1361 = vpack.c.b16 %v1053, %v1049
    %v1362 = vpack.c.b16 %v1058, %v1054
    %v1363 = vpack.c.b16 %v1059, %v1055
    %v1364 = vpack.c.b16 %v1060, %v1056
    %v1365 = vpack.c.b16 %v1061, %v1057
    %v1366 = vpack.c.b16 %v1066, %v1062
    %v1367 = vpack.c.b16 %v1067, %v1063
    %v1368 = vpack.c.b16 %v1068, %v1064
    %v1369 = vpack.c.b16 %v1069, %v1065
    %v1370 = vpack.c.b16 %v1074, %v1070
    %v1371 = vpack.c.b16 %v1075, %v1071
    %v1372 = vpack.c.b16 %v1076, %v1072
    %v1373 = vpack.c.b16 %v1077, %v1073
    %v1374 = vpack.c.b16 %v1082, %v1078
    %v1375 = vpack.c.b16 %v1083, %v1079
    %v1376 = vpack.c.b16 %v1084, %v1080
    %v1377 = vpack.c.b16 %v1085, %v1081
    %v1378 = vpack.c.b16 %v1090, %v1086
    %v1379 = vpack.c.b16 %v1091, %v1087
    %v1380 = vpack.c.b16 %v1092, %v1088
    %v1381 = vpack.c.b16 %v1093, %v1089
    %v1382 = vpack.c.b16 %v1098, %v1094
    %v1383 = vpack.c.b16 %v1099, %v1095
    %v1384 = vpack.c.b16 %v1100, %v1096
    %v1385 = vpack.c.b16 %v1101, %v1097
    %v1386 = vpack.c.b16 %v1106, %v1102
    %v1387 = vpack.c.b16 %v1107, %v1103
    %v1388 = vpack.c.b16 %v1108, %v1104
    %v1389 = vpack.c.b16 %v1109, %v1105
    %v1390 = vpack.c.b16 %v1114, %v1110
    %v1391 = vpack.c.b16 %v1115, %v1111
    %v1392 = vpack.c.b16 %v1116, %v1112
    %v1393 = vpack.c.b16 %v1117, %v1113
    %v1394 = vpack.c.b16 %v1122, %v1118
    %v1395 = vpack.c.b16 %v1123, %v1119
    %v1396 = vpack.c.b16 %v1124, %v1120
    %v1397 = vpack.c.b16 %v1125, %v1121
    %v1398 = vpack.c.b16 %v1130, %v1126
    %v1399 = vpack.c.b16 %v1131, %v1127
    %v1400 = vpack.c.b16 %v1132, %v1128
    %v1401 = vpack.c.b16 %v1133, %v1129
    %v1402 = vpack.c.b16 %v1138, %v1134
    %v1403 = vpack.c.b16 %v1139, %v1135
    %v1404 = vpack.c.b16 %v1140, %v1136
    %v1405 = vpack.c.b16 %v1141, %v1137
    %v1406 = vpack.c.b16 %v1146, %v1142
    %v1407 = vpack.c.b16 %v1147, %v1143
    %v1408 = vpack.c.b16 %v1148, %v1144
    %v1409 = vpack.c.b16 %v1149, %v1145
    %v1410 = vpack.c.b16 %v1154, %v1150
    %v1411 = vpack.c.b16 %v1155, %v1151
    %v1412 = vpack.c.b16 %v1156, %v1152
    %v1413 = vpack.c.b16 %v1157, %v1153
    %1670 = vmatprep.subr.bf16.mxu0 %v1159
    %1671 = vmatpush1.bf16.msra.mxu0 %v1158
    %1672 = vmatprep.subr.bf16.mxu0 %v1163
    %1673 = vmatpush1.bf16.msra.mxu0 %v1162
    %1674 = vmatprep.subr.bf16.mxu0 %v1167
    %1675 = vmatpush1.bf16.msra.mxu0 %v1166
    %1676 = vmatprep.subr.bf16.mxu0 %v1171
    %1677 = vmatpush1.bf16.msra.mxu0 %v1170
    %1678 = vmatprep.subr.bf16.mxu0 %v1175
    %1679 = vmatpush1.bf16.msra.mxu0 %v1174
    %1680 = vmatprep.subr.bf16.mxu0 %v1179
    %1681 = vmatpush1.bf16.msra.mxu0 %v1178
    %1682 = vmatprep.subr.bf16.mxu0 %v1183
    %1683 = vmatpush1.bf16.msra.mxu0 %v1182
    %1684 = vmatprep.subr.bf16.mxu0 %v1187
    %1685 = vmatpush1.bf16.msra.mxu0 %v1186
    %1686 = vmatprep.subr.bf16.mxu0 %v1191
    %1687 = vmatpush1.bf16.msra.mxu0 %v1190
    %1688 = vmatprep.subr.bf16.mxu0 %v1195
    %1689 = vmatpush1.bf16.msra.mxu0 %v1194
    %1690 = vmatprep.subr.bf16.mxu0 %v1199
    %1691 = vmatpush1.bf16.msra.mxu0 %v1198
    %1692 = vmatprep.subr.bf16.mxu0 %v1203
    %1693 = vmatpush1.bf16.msra.mxu0 %v1202
    %1694 = vmatprep.subr.bf16.mxu0 %v1207
    %1695 = vmatpush1.bf16.msra.mxu0 %v1206
    %1696 = vmatprep.subr.bf16.mxu0 %v1211
    %1697 = vmatpush1.bf16.msra.mxu0 %v1210
    %1698 = vmatprep.subr.bf16.mxu0 %v1215
    %1699 = vmatpush1.bf16.msra.mxu0 %v1214
    %1700 = vmatprep.subr.bf16.mxu0 %v1219
    %1701 = vmatpush1.bf16.msra.mxu0 %v1218
    %1702 = vmatprep.mubr.bf16.mxu0 %v105
    %1703 = vmatmul.mubr.bf16.gmra.mrb[0].mxu0 %v104
    %v1704 = vpop.f32.mrb[0].mxu0
    %v1705 = vadd.f32 %v373, %v1704
    %v1706 = vpop.f32.mrb[0].mxu0
    %v1707 = vadd.f32 %v377, %v1706
    %v1708 = vpop.f32.mrb[0].mxu0
    %v1709 = vpop.f32.mrb[0].mxu0
    %1710 = vdwg.mxu0
    %1711 = vmatprep.subr.bf16.mxu0 %v1223
    %1712 = vmatpush1.bf16.msra.mxu0 %v1222
    %1713 = vmatprep.subr.bf16.mxu0 %v1227
    %1714 = vmatpush1.bf16.msra.mxu0 %v1226
    %1715 = vmatprep.subr.bf16.mxu0 %v1231
    %1716 = vmatpush1.bf16.msra.mxu0 %v1230
    %1717 = vmatprep.subr.bf16.mxu0 %v1235
    %1718 = vmatpush1.bf16.msra.mxu0 %v1234
    %1719 = vmatprep.subr.bf16.mxu0 %v1239
    %1720 = vmatpush1.bf16.msra.mxu0 %v1238
    %1721 = vmatprep.subr.bf16.mxu0 %v1243
    %1722 = vmatpush1.bf16.msra.mxu0 %v1242
    %1723 = vmatprep.subr.bf16.mxu0 %v1247
    %1724 = vmatpush1.bf16.msra.mxu0 %v1246
    %1725 = vmatprep.subr.bf16.mxu0 %v1251
    %1726 = vmatpush1.bf16.msra.mxu0 %v1250
    %1727 = vmatprep.subr.bf16.mxu0 %v1255
    %1728 = vmatpush1.bf16.msra.mxu0 %v1254
    %1729 = vmatprep.subr.bf16.mxu0 %v1259
    %1730 = vmatpush1.bf16.msra.mxu0 %v1258
    %1731 = vmatprep.subr.bf16.mxu0 %v1263
    %1732 = vmatpush1.bf16.msra.mxu0 %v1262
    %1733 = vmatprep.subr.bf16.mxu0 %v1267
    %1734 = vmatpush1.bf16.msra.mxu0 %v1266
    %1735 = vmatprep.subr.bf16.mxu0 %v1271
    %1736 = vmatpush1.bf16.msra.mxu0 %v1270
    %1737 = vmatprep.subr.bf16.mxu0 %v1275
    %1738 = vmatpush1.bf16.msra.mxu0 %v1274
    %1739 = vmatprep.subr.bf16.mxu0 %v1279
    %1740 = vmatpush1.bf16.msra.mxu0 %v1278
    %1741 = vmatprep.subr.bf16.mxu0 %v1283
    %1742 = vmatpush1.bf16.msra.mxu0 %v1282
    %1743 = vmatprep.mubr.bf16.mxu0 %v107
    %1744 = vmatmul.mubr.bf16.gmra.mrb[0].mxu0 %v106
    %v1745 = vpop.f32.mrb[0].mxu0
    %v1746 = vadd.f32 %v1705, %v1745
    %v1747 = vpop.f32.mrb[0].mxu0
    %v1748 = vadd.f32 %v1707, %v1747
    %v1749 = vpop.f32.mrb[0].mxu0
    %v1750 = vpop.f32.mrb[0].mxu0
    %1751 = vdwg.mxu0
    %1752 = vmatprep.subr.bf16.mxu0 %v1287
    %1753 = vmatpush1.bf16.msra.mxu0 %v1286
    %1754 = vmatprep.subr.bf16.mxu0 %v1291
    %1755 = vmatpush1.bf16.msra.mxu0 %v1290
    %1756 = vmatprep.subr.bf16.mxu0 %v1295
    %1757 = vmatpush1.bf16.msra.mxu0 %v1294
    %1758 = vmatprep.subr.bf16.mxu0 %v1299
    %1759 = vmatpush1.bf16.msra.mxu0 %v1298
    %1760 = vmatprep.subr.bf16.mxu0 %v1303
    %1761 = vmatpush1.bf16.msra.mxu0 %v1302
    %1762 = vmatprep.subr.bf16.mxu0 %v1307
    %1763 = vmatpush1.bf16.msra.mxu0 %v1306
    %1764 = vmatprep.subr.bf16.mxu0 %v1311
    %1765 = vmatpush1.bf16.msra.mxu0 %v1310
    %1766 = vmatprep.subr.bf16.mxu0 %v1315
    %1767 = vmatpush1.bf16.msra.mxu0 %v1314
    %1768 = vmatprep.subr.bf16.mxu0 %v1319
    %1769 = vmatpush1.bf16.msra.mxu0 %v1318
    %1770 = vmatprep.subr.bf16.mxu0 %v1323
    %1771 = vmatpush1.bf16.msra.mxu0 %v1322
    %1772 = vmatprep.subr.bf16.mxu0 %v1327
    %1773 = vmatpush1.bf16.msra.mxu0 %v1326
    %1774 = vmatprep.subr.bf16.mxu0 %v1331
    %1775 = vmatpush1.bf16.msra.mxu0 %v1330
    %1776 = vmatprep.subr.bf16.mxu0 %v1335
    %1777 = vmatpush1.bf16.msra.mxu0 %v1334
    %1778 = vmatprep.subr.bf16.mxu0 %v1339
    %1779 = vmatpush1.bf16.msra.mxu0 %v1338
    %1780 = vmatprep.subr.bf16.mxu0 %v1343
    %1781 = vmatpush1.bf16.msra.mxu0 %v1342
    %1782 = vmatprep.subr.bf16.mxu0 %v1347
    %1783 = vmatpush1.bf16.msra.mxu0 %v1346
    %1784 = vmatprep.mubr.bf16.mxu0 %v109
    %1785 = vmatmul.mubr.bf16.gmra.mrb[0].mxu0 %v108
    %v1786 = vpop.f32.mrb[0].mxu0
    %v1787 = vadd.f32 %v1746, %v1786
    %v1788 = vpop.f32.mrb[0].mxu0
    %v1789 = vadd.f32 %v1748, %v1788
    %v1790 = vpop.f32.mrb[0].mxu0
    %v1791 = vpop.f32.mrb[0].mxu0
    %1792 = vdwg.mxu0
    %1793 = vmatprep.subr.bf16.mxu0 %v1351
    %1794 = vmatpush1.bf16.msra.mxu0 %v1350
    %1795 = vmatprep.subr.bf16.mxu0 %v1355
    %1796 = vmatpush1.bf16.msra.mxu0 %v1354
    %1797 = vmatprep.subr.bf16.mxu0 %v1359
    %1798 = vmatpush1.bf16.msra.mxu0 %v1358
    %1799 = vmatprep.subr.bf16.mxu0 %v1363
    %1800 = vmatpush1.bf16.msra.mxu0 %v1362
    %1801 = vmatprep.subr.bf16.mxu0 %v1367
    %1802 = vmatpush1.bf16.msra.mxu0 %v1366
    %1803 = vmatprep.subr.bf16.mxu0 %v1371
    %1804 = vmatpush1.bf16.msra.mxu0 %v1370
    %1805 = vmatprep.subr.bf16.mxu0 %v1375
    %1806 = vmatpush1.bf16.msra.mxu0 %v1374
    %1807 = vmatprep.subr.bf16.mxu0 %v1379
    %1808 = vmatpush1.bf16.msra.mxu0 %v1378
    %1809 = vmatprep.subr.bf16.mxu0 %v1383
    %1810 = vmatpush1.bf16.msra.mxu0 %v1382
    %1811 = vmatprep.subr.bf16.mxu0 %v1387
    %1812 = vmatpush1.bf16.msra.mxu0 %v1386
    %1813 = vmatprep.subr.bf16.mxu0 %v1391
    %1814 = vmatpush1.bf16.msra.mxu0 %v1390
    %1815 = vmatprep.subr.bf16.mxu0 %v1395
    %1816 = vmatpush1.bf16.msra.mxu0 %v1394
    %1817 = vmatprep.subr.bf16.mxu0 %v1399
    %1818 = vmatpush1.bf16.msra.mxu0 %v1398
    %1819 = vmatprep.subr.bf16.mxu0 %v1403
    %1820 = vmatpush1.bf16.msra.mxu0 %v1402
    %1821 = vmatprep.subr.bf16.mxu0 %v1407
    %1822 = vmatpush1.bf16.msra.mxu0 %v1406
    %1823 = vmatprep.subr.bf16.mxu0 %v1411
    %1824 = vmatpush1.bf16.msra.mxu0 %v1410
    %1825 = vmatprep.mubr.bf16.mxu0 %v111
    %1826 = vmatmul.mubr.bf16.gmra.mrb[0].mxu0 %v110
    %v1827 = vpop.f32.mrb[0].mxu0
    %v1828 = vadd.f32 %v1787, %v1827
    %v1829 = vpop.f32.mrb[0].mxu0
    %v1830 = vadd.f32 %v1789, %v1829
    %v1831 = vpop.f32.mrb[0].mxu0
    %v1832 = vpop.f32.mrb[0].mxu0
    %1833 = vdwg.mxu0
    %1834 = vmatprep.subr.bf16.mxu0 %v1161
    %1835 = vmatpush1.bf16.msra.mxu0 %v1160
    %1836 = vmatprep.subr.bf16.mxu0 %v1165
    %1837 = vmatpush1.bf16.msra.mxu0 %v1164
    %1838 = vmatprep.subr.bf16.mxu0 %v1169
    %1839 = vmatpush1.bf16.msra.mxu0 %v1168
    %1840 = vmatprep.subr.bf16.mxu0 %v1173
    %1841 = vmatpush1.bf16.msra.mxu0 %v1172
    %1842 = vmatprep.subr.bf16.mxu0 %v1177
    %1843 = vmatpush1.bf16.msra.mxu0 %v1176
    %1844 = vmatprep.subr.bf16.mxu0 %v1181
    %1845 = vmatpush1.bf16.msra.mxu0 %v1180
    %1846 = vmatprep.subr.bf16.mxu0 %v1185
    %1847 = vmatpush1.bf16.msra.mxu0 %v1184
    %1848 = vmatprep.subr.bf16.mxu0 %v1189
    %1849 = vmatpush1.bf16.msra.mxu0 %v1188
    %1850 = vmatprep.subr.bf16.mxu0 %v1193
    %1851 = vmatpush1.bf16.msra.mxu0 %v1192
    %1852 = vmatprep.subr.bf16.mxu0 %v1197
    %1853 = vmatpush1.bf16.msra.mxu0 %v1196
    %1854 = vmatprep.subr.bf16.mxu0 %v1201
    %1855 = vmatpush1.bf16.msra.mxu0 %v1200
    %1856 = vmatprep.subr.bf16.mxu0 %v1205
    %1857 = vmatpush1.bf16.msra.mxu0 %v1204
    %1858 = vmatprep.subr.bf16.mxu0 %v1209
    %1859 = vmatpush1.bf16.msra.mxu0 %v1208
    %1860 = vmatprep.subr.bf16.mxu0 %v1213
    %1861 = vmatpush1.bf16.msra.mxu0 %v1212
    %1862 = vmatprep.subr.bf16.mxu0 %v1217
    %1863 = vmatpush1.bf16.msra.mxu0 %v1216
    %1864 = vmatprep.subr.bf16.mxu0 %v1221
    %1865 = vmatpush1.bf16.msra.mxu0 %v1220
    %1866 = vmatprep.mubr.bf16.mxu0 %v105
    %1867 = vmatmul.mubr.bf16.gmra.mrb[0].mxu0 %v104
    %v1868 = vpop.f32.mrb[0].mxu0
    %v1869 = vadd.f32 %v381, %v1868
    %v1870 = vpop.f32.mrb[0].mxu0
    %v1871 = vadd.f32 %v385, %v1870
    %v1872 = vpop.f32.mrb[0].mxu0
    %v1873 = vpop.f32.mrb[0].mxu0
    %1874 = vdwg.mxu0
    %1875 = vmatprep.subr.bf16.mxu0 %v1225
    %1876 = vmatpush1.bf16.msra.mxu0 %v1224
    %1877 = vmatprep.subr.bf16.mxu0 %v1229
    %1878 = vmatpush1.bf16.msra.mxu0 %v1228
    %1879 = vmatprep.subr.bf16.mxu0 %v1233
    %1880 = vmatpush1.bf16.msra.mxu0 %v1232
    %1881 = vmatprep.subr.bf16.mxu0 %v1237
    %1882 = vmatpush1.bf16.msra.mxu0 %v1236
    %1883 = vmatprep.subr.bf16.mxu0 %v1241
    %1884 = vmatpush1.bf16.msra.mxu0 %v1240
    %1885 = vmatprep.subr.bf16.mxu0 %v1245
    %1886 = vmatpush1.bf16.msra.mxu0 %v1244
    %1887 = vmatprep.subr.bf16.mxu0 %v1249
    %1888 = vmatpush1.bf16.msra.mxu0 %v1248
    %1889 = vmatprep.subr.bf16.mxu0 %v1253
    %1890 = vmatpush1.bf16.msra.mxu0 %v1252
    %1891 = vmatprep.subr.bf16.mxu0 %v1257
    %1892 = vmatpush1.bf16.msra.mxu0 %v1256
    %1893 = vmatprep.subr.bf16.mxu0 %v1261
    %1894 = vmatpush1.bf16.msra.mxu0 %v1260
    %1895 = vmatprep.subr.bf16.mxu0 %v1265
    %1896 = vmatpush1.bf16.msra.mxu0 %v1264
    %1897 = vmatprep.subr.bf16.mxu0 %v1269
    %1898 = vmatpush1.bf16.msra.mxu0 %v1268
    %1899 = vmatprep.subr.bf16.mxu0 %v1273
    %1900 = vmatpush1.bf16.msra.mxu0 %v1272
    %1901 = vmatprep.subr.bf16.mxu0 %v1277
    %1902 = vmatpush1.bf16.msra.mxu0 %v1276
    %1903 = vmatprep.subr.bf16.mxu0 %v1281
    %1904 = vmatpush1.bf16.msra.mxu0 %v1280
    %1905 = vmatprep.subr.bf16.mxu0 %v1285
    %1906 = vmatpush1.bf16.msra.mxu0 %v1284
    %1907 = vmatprep.mubr.bf16.mxu0 %v107
    %1908 = vmatmul.mubr.bf16.gmra.mrb[0].mxu0 %v106
    %v1909 = vpop.f32.mrb[0].mxu0
    %v1910 = vadd.f32 %v1869, %v1909
    %v1911 = vpop.f32.mrb[0].mxu0
    %v1912 = vadd.f32 %v1871, %v1911
    %v1913 = vpop.f32.mrb[0].mxu0
    %v1914 = vpop.f32.mrb[0].mxu0
    %1915 = vdwg.mxu0
    %1916 = vmatprep.subr.bf16.mxu0 %v1289
    %1917 = vmatpush1.bf16.msra.mxu0 %v1288
    %1918 = vmatprep.subr.bf16.mxu0 %v1293
    %1919 = vmatpush1.bf16.msra.mxu0 %v1292
    %1920 = vmatprep.subr.bf16.mxu0 %v1297
    %1921 = vmatpush1.bf16.msra.mxu0 %v1296
    %1922 = vmatprep.subr.bf16.mxu0 %v1301
    %1923 = vmatpush1.bf16.msra.mxu0 %v1300
    %1924 = vmatprep.subr.bf16.mxu0 %v1305
    %1925 = vmatpush1.bf16.msra.mxu0 %v1304
    %1926 = vmatprep.subr.bf16.mxu0 %v1309
    %1927 = vmatpush1.bf16.msra.mxu0 %v1308
    %1928 = vmatprep.subr.bf16.mxu0 %v1313
    %1929 = vmatpush1.bf16.msra.mxu0 %v1312
    %1930 = vmatprep.subr.bf16.mxu0 %v1317
    %1931 = vmatpush1.bf16.msra.mxu0 %v1316
    %1932 = vmatprep.subr.bf16.mxu0 %v1321
    %1933 = vmatpush1.bf16.msra.mxu0 %v1320
    %1934 = vmatprep.subr.bf16.mxu0 %v1325
    %1935 = vmatpush1.bf16.msra.mxu0 %v1324
    %1936 = vmatprep.subr.bf16.mxu0 %v1329
    %1937 = vmatpush1.bf16.msra.mxu0 %v1328
    %1938 = vmatprep.subr.bf16.mxu0 %v1333
    %1939 = vmatpush1.bf16.msra.mxu0 %v1332
    %1940 = vmatprep.subr.bf16.mxu0 %v1337
    %1941 = vmatpush1.bf16.msra.mxu0 %v1336
    %1942 = vmatprep.subr.bf16.mxu0 %v1341
    %1943 = vmatpush1.bf16.msra.mxu0 %v1340
    %1944 = vmatprep.subr.bf16.mxu0 %v1345
    %1945 = vmatpush1.bf16.msra.mxu0 %v1344
    %1946 = vmatprep.subr.bf16.mxu0 %v1349
    %1947 = vmatpush1.bf16.msra.mxu0 %v1348
    %1948 = vmatprep.mubr.bf16.mxu0 %v109
    %1949 = vmatmul.mubr.bf16.gmra.mrb[0].mxu0 %v108
    %v1950 = vpop.f32.mrb[0].mxu0
    %v1951 = vadd.f32 %v1910, %v1950
    %v1952 = vpop.f32.mrb[0].mxu0
    %v1953 = vadd.f32 %v1912, %v1952
    %v1954 = vpop.f32.mrb[0].mxu0
    %v1955 = vpop.f32.mrb[0].mxu0
    %1956 = vdwg.mxu0
    %1957 = vmatprep.subr.bf16.mxu0 %v1353
    %1958 = vmatpush1.bf16.msra.mxu0 %v1352
    %1959 = vmatprep.subr.bf16.mxu0 %v1357
    %1960 = vmatpush1.bf16.msra.mxu0 %v1356
    %1961 = vmatprep.subr.bf16.mxu0 %v1361
    %1962 = vmatpush1.bf16.msra.mxu0 %v1360
    %1963 = vmatprep.subr.bf16.mxu0 %v1365
    %1964 = vmatpush1.bf16.msra.mxu0 %v1364
    %1965 = vmatprep.subr.bf16.mxu0 %v1369
    %1966 = vmatpush1.bf16.msra.mxu0 %v1368
    %1967 = vmatprep.subr.bf16.mxu0 %v1373
    %1968 = vmatpush1.bf16.msra.mxu0 %v1372
    %1969 = vmatprep.subr.bf16.mxu0 %v1377
    %1970 = vmatpush1.bf16.msra.mxu0 %v1376
    %1971 = vmatprep.subr.bf16.mxu0 %v1381
    %1972 = vmatpush1.bf16.msra.mxu0 %v1380
    %1973 = vmatprep.subr.bf16.mxu0 %v1385
    %1974 = vmatpush1.bf16.msra.mxu0 %v1384
    %1975 = vmatprep.subr.bf16.mxu0 %v1389
    %1976 = vmatpush1.bf16.msra.mxu0 %v1388
    %1977 = vmatprep.subr.bf16.mxu0 %v1393
    %1978 = vmatpush1.bf16.msra.mxu0 %v1392
    %1979 = vmatprep.subr.bf16.mxu0 %v1397
    %1980 = vmatpush1.bf16.msra.mxu0 %v1396
    %1981 = vmatprep.subr.bf16.mxu0 %v1401
    %1982 = vmatpush1.bf16.msra.mxu0 %v1400
    %1983 = vmatprep.subr.bf16.mxu0 %v1405
    %1984 = vmatpush1.bf16.msra.mxu0 %v1404
    %1985 = vmatprep.subr.bf16.mxu0 %v1409
    %1986 = vmatpush1.bf16.msra.mxu0 %v1408
    %1987 = vmatprep.subr.bf16.mxu0 %v1413
    %1988 = vmatpush1.bf16.msra.mxu0 %v1412
    %1989 = vmatprep.mubr.bf16.mxu0 %v111
    %1990 = vmatmul.mubr.bf16.gmra.mrb[0].mxu0 %v110
    %v1991 = vpop.f32.mrb[0].mxu0
    %v1992 = vadd.f32 %v1951, %v1991
    %v1993 = vpop.f32.mrb[0].mxu0
    %v1994 = vadd.f32 %v1953, %v1993
    %v1995 = vpop.f32.mrb[0].mxu0
    %v1996 = vpop.f32.mrb[0].mxu0
    %1997 = vdwg.mxu0
    %v1998 = vmax.f32 %v1828, 0.0
    %v1999 = vmax.f32 %v1830, 0.0
    %v2000 = vmax.f32 %v1992, 0.0
    %v2001 = vmax.f32 %v1994, 0.0
    %v2002 = vpack.c.bf16 %v1998, %v1998
    %v2003 = vpack.c.bf16 %v1999, %v1999
    %v2004 = vpack.c.bf16 %v2000, %v2000
    %v2005 = vpack.c.bf16 %v2001, %v2001
    %v2006 = vld [vmem:[#allocation6] sm:$0xff]
    %v2007 = vld [vmem:[#allocation6 + $0x8] sm:$0xff]
    %v2008 = vld [vmem:[#allocation6 + $0x10] sm:$0xff]
    %v2009 = vld [vmem:[#allocation6 + $0x18] sm:$0xff]
    %v2010 = vld [vmem:[#allocation6 + $0x20] sm:$0xff]
    %v2011 = vld [vmem:[#allocation6 + $0x28] sm:$0xff]
    %v2012 = vld [vmem:[#allocation6 + $0x30] sm:$0xff]
    %v2013 = vld [vmem:[#allocation6 + $0x38] sm:$0xff]
    %v2014 = vld [vmem:[#allocation6 + $0x40] sm:$0xff]
    %v2015 = vld [vmem:[#allocation6 + $0x48] sm:$0xff]
    %v2016 = vld [vmem:[#allocation6 + $0x50] sm:$0xff]
    %v2017 = vld [vmem:[#allocation6 + $0x58] sm:$0xff]
    %v2018 = vld [vmem:[#allocation6 + $0x60] sm:$0xff]
    %v2019 = vld [vmem:[#allocation6 + $0x68] sm:$0xff]
    %v2020 = vld [vmem:[#allocation6 + $0x70] sm:$0xff]
    %v2021 = vld [vmem:[#allocation6 + $0x78] sm:$0xff]
    %v2022 = vld [vmem:[#allocation6 + $0x80] sm:$0xff]
    %v2023 = vld [vmem:[#allocation6 + $0x88] sm:$0xff]
    %v2024 = vld [vmem:[#allocation6 + $0x90] sm:$0xff]
    %v2025 = vld [vmem:[#allocation6 + $0x98] sm:$0xff]
    %v2026 = vld [vmem:[#allocation6 + $0xa0] sm:$0xff]
    %v2027 = vld [vmem:[#allocation6 + $0xa8] sm:$0xff]
    %v2028 = vld [vmem:[#allocation6 + $0xb0] sm:$0xff]
    %v2029 = vld [vmem:[#allocation6 + $0xb8] sm:$0xff]
    %v2030 = vld [vmem:[#allocation6 + $0xc0] sm:$0xff]
    %v2031 = vld [vmem:[#allocation6 + $0xc8] sm:$0xff]
    %v2032 = vld [vmem:[#allocation6 + $0xd0] sm:$0xff]
    %v2033 = vld [vmem:[#allocation6 + $0xd8] sm:$0xff]
    %v2034 = vld [vmem:[#allocation6 + $0xe0] sm:$0xff]
    %v2035 = vld [vmem:[#allocation6 + $0xe8] sm:$0xff]
    %v2036 = vld [vmem:[#allocation6 + $0xf0] sm:$0xff]
    %v2037 = vld [vmem:[#allocation6 + $0xf8] sm:$0xff]
    %v2038 = vld [vmem:[#allocation6 + $0x100] sm:$0xff]
    %v2039 = vld [vmem:[#allocation6 + $0x108] sm:$0xff]
    %v2040 = vld [vmem:[#allocation6 + $0x110] sm:$0xff]
    %v2041 = vld [vmem:[#allocation6 + $0x118] sm:$0xff]
    %v2042 = vld [vmem:[#allocation6 + $0x120] sm:$0xff]
    %v2043 = vld [vmem:[#allocation6 + $0x128] sm:$0xff]
    %v2044 = vld [vmem:[#allocation6 + $0x130] sm:$0xff]
    %v2045 = vld [vmem:[#allocation6 + $0x138] sm:$0xff]
    %v2046 = vld [vmem:[#allocation6 + $0x140] sm:$0xff]
    %v2047 = vld [vmem:[#allocation6 + $0x148] sm:$0xff]
    %v2048 = vld [vmem:[#allocation6 + $0x150] sm:$0xff]
    %v2049 = vld [vmem:[#allocation6 + $0x158] sm:$0xff]
    %v2050 = vld [vmem:[#allocation6 + $0x160] sm:$0xff]
    %v2051 = vld [vmem:[#allocation6 + $0x168] sm:$0xff]
    %v2052 = vld [vmem:[#allocation6 + $0x170] sm:$0xff]
    %v2053 = vld [vmem:[#allocation6 + $0x178] sm:$0xff]
    %v2054 = vld [vmem:[#allocation6 + $0x180] sm:$0xff]
    %v2055 = vld [vmem:[#allocation6 + $0x188] sm:$0xff]
    %v2056 = vld [vmem:[#allocation6 + $0x190] sm:$0xff]
    %v2057 = vld [vmem:[#allocation6 + $0x198] sm:$0xff]
    %v2058 = vld [vmem:[#allocation6 + $0x1a0] sm:$0xff]
    %v2059 = vld [vmem:[#allocation6 + $0x1a8] sm:$0xff]
    %v2060 = vld [vmem:[#allocation6 + $0x1b0] sm:$0xff]
    %v2061 = vld [vmem:[#allocation6 + $0x1b8] sm:$0xff]
    %v2062 = vld [vmem:[#allocation6 + $0x1c0] sm:$0xff]
    %v2063 = vld [vmem:[#allocation6 + $0x1c8] sm:$0xff]
    %v2064 = vld [vmem:[#allocation6 + $0x1d0] sm:$0xff]
    %v2065 = vld [vmem:[#allocation6 + $0x1d8] sm:$0xff]
    %v2066 = vld [vmem:[#allocation6 + $0x1e0] sm:$0xff]
    %v2067 = vld [vmem:[#allocation6 + $0x1e8] sm:$0xff]
    %v2068 = vld [vmem:[#allocation6 + $0x1f0] sm:$0xff]
    %v2069 = vld [vmem:[#allocation6 + $0x1f8] sm:$0xff]
    %v2070 = vld [vmem:[%s4] sm:$0x3]
    %v2072 = vlaneseq
    %v2073 = vshrl.u32 %v2072, 7
    %v2074 = vsub.s32 0, %v2073
    %v2075 = vrot.slane %v2070, %v2074
    %v2076 = vlaneseq
    %v2077 = vshrl.u32 %v2076, 7
    %v2078 = vsub.s32 1, %v2077
    %v2079 = vrot.slane %v2070, %v2078
    %v2146 = vunpack.c.l.b16 %v2006
    %v2147 = vunpack.c.h.b16 %v2006
    %v2148 = vunpack.c.l.b16 %v2007
    %v2149 = vunpack.c.h.b16 %v2007
    %v2150 = vunpack.c.l.b16 %v2008
    %v2151 = vunpack.c.h.b16 %v2008
    %v2152 = vunpack.c.l.b16 %v2009
    %v2153 = vunpack.c.h.b16 %v2009
    %v2154 = vunpack.c.l.b16 %v2010
    %v2155 = vunpack.c.h.b16 %v2010
    %v2156 = vunpack.c.l.b16 %v2011
    %v2157 = vunpack.c.h.b16 %v2011
    %v2158 = vunpack.c.l.b16 %v2012
    %v2159 = vunpack.c.h.b16 %v2012
    %v2160 = vunpack.c.l.b16 %v2013
    %v2161 = vunpack.c.h.b16 %v2013
    %v2162 = vunpack.c.l.b16 %v2014
    %v2163 = vunpack.c.h.b16 %v2014
    %v2164 = vunpack.c.l.b16 %v2015
    %v2165 = vunpack.c.h.b16 %v2015
    %v2166 = vunpack.c.l.b16 %v2016
    %v2167 = vunpack.c.h.b16 %v2016
    %v2168 = vunpack.c.l.b16 %v2017
    %v2169 = vunpack.c.h.b16 %v2017
    %v2170 = vunpack.c.l.b16 %v2018
    %v2171 = vunpack.c.h.b16 %v2018
    %v2172 = vunpack.c.l.b16 %v2019
    %v2173 = vunpack.c.h.b16 %v2019
    %v2174 = vunpack.c.l.b16 %v2020
    %v2175 = vunpack.c.h.b16 %v2020
    %v2176 = vunpack.c.l.b16 %v2021
    %v2177 = vunpack.c.h.b16 %v2021
    %v2178 = vunpack.c.l.b16 %v2022
    %v2179 = vunpack.c.h.b16 %v2022
    %v2180 = vunpack.c.l.b16 %v2023
    %v2181 = vunpack.c.h.b16 %v2023
    %v2182 = vunpack.c.l.b16 %v2024
    %v2183 = vunpack.c.h.b16 %v2024
    %v2184 = vunpack.c.l.b16 %v2025
    %v2185 = vunpack.c.h.b16 %v2025
    %v2186 = vunpack.c.l.b16 %v2026
    %v2187 = vunpack.c.h.b16 %v2026
    %v2188 = vunpack.c.l.b16 %v2027
    %v2189 = vunpack.c.h.b16 %v2027
    %v2190 = vunpack.c.l.b16 %v2028
    %v2191 = vunpack.c.h.b16 %v2028
    %v2192 = vunpack.c.l.b16 %v2029
    %v2193 = vunpack.c.h.b16 %v2029
    %v2194 = vunpack.c.l.b16 %v2030
    %v2195 = vunpack.c.h.b16 %v2030
    %v2196 = vunpack.c.l.b16 %v2031
    %v2197 = vunpack.c.h.b16 %v2031
    %v2198 = vunpack.c.l.b16 %v2032
    %v2199 = vunpack.c.h.b16 %v2032
    %v2200 = vunpack.c.l.b16 %v2033
    %v2201 = vunpack.c.h.b16 %v2033
    %v2202 = vunpack.c.l.b16 %v2034
    %v2203 = vunpack.c.h.b16 %v2034
    %v2204 = vunpack.c.l.b16 %v2035
    %v2205 = vunpack.c.h.b16 %v2035
    %v2206 = vunpack.c.l.b16 %v2036
    %v2207 = vunpack.c.h.b16 %v2036
    %v2208 = vunpack.c.l.b16 %v2037
    %v2209 = vunpack.c.h.b16 %v2037
    %v2210 = vunpack.c.l.b16 %v2038
    %v2211 = vunpack.c.h.b16 %v2038
    %v2212 = vunpack.c.l.b16 %v2039
    %v2213 = vunpack.c.h.b16 %v2039
    %v2214 = vunpack.c.l.b16 %v2040
    %v2215 = vunpack.c.h.b16 %v2040
    %v2216 = vunpack.c.l.b16 %v2041
    %v2217 = vunpack.c.h.b16 %v2041
    %v2218 = vunpack.c.l.b16 %v2042
    %v2219 = vunpack.c.h.b16 %v2042
    %v2220 = vunpack.c.l.b16 %v2043
    %v2221 = vunpack.c.h.b16 %v2043
    %v2222 = vunpack.c.l.b16 %v2044
    %v2223 = vunpack.c.h.b16 %v2044
    %v2224 = vunpack.c.l.b16 %v2045
    %v2225 = vunpack.c.h.b16 %v2045
    %v2226 = vunpack.c.l.b16 %v2046
    %v2227 = vunpack.c.h.b16 %v2046
    %v2228 = vunpack.c.l.b16 %v2047
    %v2229 = vunpack.c.h.b16 %v2047
    %v2230 = vunpack.c.l.b16 %v2048
    %v2231 = vunpack.c.h.b16 %v2048
    %v2232 = vunpack.c.l.b16 %v2049
    %v2233 = vunpack.c.h.b16 %v2049
    %v2234 = vunpack.c.l.b16 %v2050
    %v2235 = vunpack.c.h.b16 %v2050
    %v2236 = vunpack.c.l.b16 %v2051
    %v2237 = vunpack.c.h.b16 %v2051
    %v2238 = vunpack.c.l.b16 %v2052
    %v2239 = vunpack.c.h.b16 %v2052
    %v2240 = vunpack.c.l.b16 %v2053
    %v2241 = vunpack.c.h.b16 %v2053
    %v2242 = vunpack.c.l.b16 %v2054
    %v2243 = vunpack.c.h.b16 %v2054
    %v2244 = vunpack.c.l.b16 %v2055
    %v2245 = vunpack.c.h.b16 %v2055
    %v2246 = vunpack.c.l.b16 %v2056
    %v2247 = vunpack.c.h.b16 %v2056
    %v2248 = vunpack.c.l.b16 %v2057
    %v2249 = vunpack.c.h.b16 %v2057
    %v2250 = vunpack.c.l.b16 %v2058
    %v2251 = vunpack.c.h.b16 %v2058
    %v2252 = vunpack.c.l.b16 %v2059
    %v2253 = vunpack.c.h.b16 %v2059
    %v2254 = vunpack.c.l.b16 %v2060
    %v2255 = vunpack.c.h.b16 %v2060
    %v2256 = vunpack.c.l.b16 %v2061
    %v2257 = vunpack.c.h.b16 %v2061
    %v2258 = vunpack.c.l.b16 %v2062
    %v2259 = vunpack.c.h.b16 %v2062
    %v2260 = vunpack.c.l.b16 %v2063
    %v2261 = vunpack.c.h.b16 %v2063
    %v2262 = vunpack.c.l.b16 %v2064
    %v2263 = vunpack.c.h.b16 %v2064
    %v2264 = vunpack.c.l.b16 %v2065
    %v2265 = vunpack.c.h.b16 %v2065
    %v2266 = vunpack.c.l.b16 %v2066
    %v2267 = vunpack.c.h.b16 %v2066
    %v2268 = vunpack.c.l.b16 %v2067
    %v2269 = vunpack.c.h.b16 %v2067
    %v2270 = vunpack.c.l.b16 %v2068
    %v2271 = vunpack.c.h.b16 %v2068
    %v2272 = vunpack.c.l.b16 %v2069
    %v2273 = vunpack.c.h.b16 %v2069
    %v2274 = vpack.c.b16 %v2148, %v2146
    %v2275 = vpack.c.b16 %v2149, %v2147
    %v2276 = vpack.c.b16 %v2152, %v2150
    %v2277 = vpack.c.b16 %v2153, %v2151
    %v2278 = vpack.c.b16 %v2156, %v2154
    %v2279 = vpack.c.b16 %v2157, %v2155
    %v2280 = vpack.c.b16 %v2160, %v2158
    %v2281 = vpack.c.b16 %v2161, %v2159
    %v2282 = vpack.c.b16 %v2164, %v2162
    %v2283 = vpack.c.b16 %v2165, %v2163
    %v2284 = vpack.c.b16 %v2168, %v2166
    %v2285 = vpack.c.b16 %v2169, %v2167
    %v2286 = vpack.c.b16 %v2172, %v2170
    %v2287 = vpack.c.b16 %v2173, %v2171
    %v2288 = vpack.c.b16 %v2176, %v2174
    %v2289 = vpack.c.b16 %v2177, %v2175
    %v2290 = vpack.c.b16 %v2180, %v2178
    %v2291 = vpack.c.b16 %v2181, %v2179
    %v2292 = vpack.c.b16 %v2184, %v2182
    %v2293 = vpack.c.b16 %v2185, %v2183
    %v2294 = vpack.c.b16 %v2188, %v2186
    %v2295 = vpack.c.b16 %v2189, %v2187
    %v2296 = vpack.c.b16 %v2192, %v2190
    %v2297 = vpack.c.b16 %v2193, %v2191
    %v2298 = vpack.c.b16 %v2196, %v2194
    %v2299 = vpack.c.b16 %v2197, %v2195
    %v2300 = vpack.c.b16 %v2200, %v2198
    %v2301 = vpack.c.b16 %v2201, %v2199
    %v2302 = vpack.c.b16 %v2204, %v2202
    %v2303 = vpack.c.b16 %v2205, %v2203
    %v2304 = vpack.c.b16 %v2208, %v2206
    %v2305 = vpack.c.b16 %v2209, %v2207
    %v2306 = vpack.c.b16 %v2212, %v2210
    %v2307 = vpack.c.b16 %v2213, %v2211
    %v2308 = vpack.c.b16 %v2216, %v2214
    %v2309 = vpack.c.b16 %v2217, %v2215
    %v2310 = vpack.c.b16 %v2220, %v2218
    %v2311 = vpack.c.b16 %v2221, %v2219
    %v2312 = vpack.c.b16 %v2224, %v2222
    %v2313 = vpack.c.b16 %v2225, %v2223
    %v2314 = vpack.c.b16 %v2228, %v2226
    %v2315 = vpack.c.b16 %v2229, %v2227
    %v2316 = vpack.c.b16 %v2232, %v2230
    %v2317 = vpack.c.b16 %v2233, %v2231
    %v2318 = vpack.c.b16 %v2236, %v2234
    %v2319 = vpack.c.b16 %v2237, %v2235
    %v2320 = vpack.c.b16 %v2240, %v2238
    %v2321 = vpack.c.b16 %v2241, %v2239
    %v2322 = vpack.c.b16 %v2244, %v2242
    %v2323 = vpack.c.b16 %v2245, %v2243
    %v2324 = vpack.c.b16 %v2248, %v2246
    %v2325 = vpack.c.b16 %v2249, %v2247
    %v2326 = vpack.c.b16 %v2252, %v2250
    %v2327 = vpack.c.b16 %v2253, %v2251
    %v2328 = vpack.c.b16 %v2256, %v2254
    %v2329 = vpack.c.b16 %v2257, %v2255
    %v2330 = vpack.c.b16 %v2260, %v2258
    %v2331 = vpack.c.b16 %v2261, %v2259
    %v2332 = vpack.c.b16 %v2264, %v2262
    %v2333 = vpack.c.b16 %v2265, %v2263
    %v2334 = vpack.c.b16 %v2268, %v2266
    %v2335 = vpack.c.b16 %v2269, %v2267
    %v2336 = vpack.c.b16 %v2272, %v2270
    %v2337 = vpack.c.b16 %v2273, %v2271
    %2402 = vmatprep.subr.bf16.mxu0 %v2275
    %2403 = vmatpush1.bf16.msra.mxu0 %v2274
    %2404 = vmatprep.subr.bf16.mxu0 %v2277
    %2405 = vmatpush1.bf16.msra.mxu0 %v2276
    %2406 = vmatprep.subr.bf16.mxu0 %v2279
    %2407 = vmatpush1.bf16.msra.mxu0 %v2278
    %2408 = vmatprep.subr.bf16.mxu0 %v2281
    %2409 = vmatpush1.bf16.msra.mxu0 %v2280
    %2410 = vmatprep.subr.bf16.mxu0 %v2283
    %2411 = vmatpush1.bf16.msra.mxu0 %v2282
    %2412 = vmatprep.subr.bf16.mxu0 %v2285
    %2413 = vmatpush1.bf16.msra.mxu0 %v2284
    %2414 = vmatprep.subr.bf16.mxu0 %v2287
    %2415 = vmatpush1.bf16.msra.mxu0 %v2286
    %2416 = vmatprep.subr.bf16.mxu0 %v2289
    %2417 = vmatpush1.bf16.msra.mxu0 %v2288
    %2418 = vmatprep.subr.bf16.mxu0 %v2291
    %2419 = vmatpush1.bf16.msra.mxu0 %v2290
    %2420 = vmatprep.subr.bf16.mxu0 %v2293
    %2421 = vmatpush1.bf16.msra.mxu0 %v2292
    %2422 = vmatprep.subr.bf16.mxu0 %v2295
    %2423 = vmatpush1.bf16.msra.mxu0 %v2294
    %2424 = vmatprep.subr.bf16.mxu0 %v2297
    %2425 = vmatpush1.bf16.msra.mxu0 %v2296
    %2426 = vmatprep.subr.bf16.mxu0 %v2299
    %2427 = vmatpush1.bf16.msra.mxu0 %v2298
    %2428 = vmatprep.subr.bf16.mxu0 %v2301
    %2429 = vmatpush1.bf16.msra.mxu0 %v2300
    %2430 = vmatprep.subr.bf16.mxu0 %v2303
    %2431 = vmatpush1.bf16.msra.mxu0 %v2302
    %2432 = vmatprep.subr.bf16.mxu0 %v2305
    %2433 = vmatpush1.bf16.msra.mxu0 %v2304
    %2434 = vmatprep.mubr.bf16.mxu0 %v2003
    %2435 = vmatmul.mubr.bf16.gmra.mrb[0].mxu0 %v2002
    %v2436 = vpop.f32.mrb[0].mxu0
    %v2437 = vadd.f32 %v2075, %v2436
    %v2438 = vpop.f32.mrb[0].mxu0
    %v2439 = vadd.f32 %v2079, %v2438
    %v2440 = vpop.f32.mrb[0].mxu0
    %v2441 = vpop.f32.mrb[0].mxu0
    %2442 = vdwg.mxu0
    %2443 = vmatprep.subr.bf16.mxu0 %v2307
    %2444 = vmatpush1.bf16.msra.mxu0 %v2306
    %2445 = vmatprep.subr.bf16.mxu0 %v2309
    %2446 = vmatpush1.bf16.msra.mxu0 %v2308
    %2447 = vmatprep.subr.bf16.mxu0 %v2311
    %2448 = vmatpush1.bf16.msra.mxu0 %v2310
    %2449 = vmatprep.subr.bf16.mxu0 %v2313
    %2450 = vmatpush1.bf16.msra.mxu0 %v2312
    %2451 = vmatprep.subr.bf16.mxu0 %v2315
    %2452 = vmatpush1.bf16.msra.mxu0 %v2314
    %2453 = vmatprep.subr.bf16.mxu0 %v2317
    %2454 = vmatpush1.bf16.msra.mxu0 %v2316
    %2455 = vmatprep.subr.bf16.mxu0 %v2319
    %2456 = vmatpush1.bf16.msra.mxu0 %v2318
    %2457 = vmatprep.subr.bf16.mxu0 %v2321
    %2458 = vmatpush1.bf16.msra.mxu0 %v2320
    %2459 = vmatprep.subr.bf16.mxu0 %v2323
    %2460 = vmatpush1.bf16.msra.mxu0 %v2322
    %2461 = vmatprep.subr.bf16.mxu0 %v2325
    %2462 = vmatpush1.bf16.msra.mxu0 %v2324
    %2463 = vmatprep.subr.bf16.mxu0 %v2327
    %2464 = vmatpush1.bf16.msra.mxu0 %v2326
    %2465 = vmatprep.subr.bf16.mxu0 %v2329
    %2466 = vmatpush1.bf16.msra.mxu0 %v2328
    %2467 = vmatprep.subr.bf16.mxu0 %v2331
    %2468 = vmatpush1.bf16.msra.mxu0 %v2330
    %2469 = vmatprep.subr.bf16.mxu0 %v2333
    %2470 = vmatpush1.bf16.msra.mxu0 %v2332
    %2471 = vmatprep.subr.bf16.mxu0 %v2335
    %2472 = vmatpush1.bf16.msra.mxu0 %v2334
    %2473 = vmatprep.subr.bf16.mxu0 %v2337
    %2474 = vmatpush1.bf16.msra.mxu0 %v2336
    %2475 = vmatprep.mubr.bf16.mxu0 %v2005
    %2476 = vmatmul.mubr.bf16.gmra.mrb[0].mxu0 %v2004
    %v2477 = vpop.f32.mrb[0].mxu0
    %v2478 = vadd.f32 %v2437, %v2477
    %v2479 = vpop.f32.mrb[0].mxu0
    %v2480 = vadd.f32 %v2439, %v2479
    %v2481 = vpop.f32.mrb[0].mxu0
    %v2482 = vpop.f32.mrb[0].mxu0
    %2483 = vdwg.mxu0
    %v2484 = vmax.f32 %v2478, 0.0
    %v2485 = vmax.f32 %v2480, 0.0
    %v2486 = vpack.c.bf16 %v2484, %v2484
    %v2487 = vpack.c.bf16 %v2485, %v2485
    %v2488 = vld [vmem:[#allocation7] sm:$0xf]
    %v2489 = vld [vmem:[#allocation7 + $0x4] sm:$0xf]
    %v2490 = vld [vmem:[#allocation7 + $0x8] sm:$0xf]
    %v2491 = vld [vmem:[#allocation7 + $0xc] sm:$0xf]
    %v2492 = vld [vmem:[#allocation7 + $0x10] sm:$0xf]
    %v2493 = vld [vmem:[#allocation7 + $0x14] sm:$0xf]
    %v2494 = vld [vmem:[#allocation7 + $0x18] sm:$0xf]
    %v2495 = vld [vmem:[#allocation7 + $0x1c] sm:$0xf]
    %v2496 = vld [vmem:[#allocation7 + $0x20] sm:$0xf]
    %v2497 = vld [vmem:[#allocation7 + $0x24] sm:$0xf]
    %v2498 = vld [vmem:[#allocation7 + $0x28] sm:$0xf]
    %v2499 = vld [vmem:[#allocation7 + $0x2c] sm:$0xf]
    %v2500 = vld [vmem:[#allocation7 + $0x30] sm:$0xf]
    %v2501 = vld [vmem:[#allocation7 + $0x34] sm:$0xf]
    %v2502 = vld [vmem:[#allocation7 + $0x38] sm:$0xf]
    %v2503 = vld [vmem:[#allocation7 + $0x3c] sm:$0xf]
    %v2504 = vld [vmem:[#allocation7 + $0x40] sm:$0xf]
    %v2505 = vld [vmem:[#allocation7 + $0x44] sm:$0xf]
    %v2506 = vld [vmem:[#allocation7 + $0x48] sm:$0xf]
    %v2507 = vld [vmem:[#allocation7 + $0x4c] sm:$0xf]
    %v2508 = vld [vmem:[#allocation7 + $0x50] sm:$0xf]
    %v2509 = vld [vmem:[#allocation7 + $0x54] sm:$0xf]
    %v2510 = vld [vmem:[#allocation7 + $0x58] sm:$0xf]
    %v2511 = vld [vmem:[#allocation7 + $0x5c] sm:$0xf]
    %v2512 = vld [vmem:[#allocation7 + $0x60] sm:$0xf]
    %v2513 = vld [vmem:[#allocation7 + $0x64] sm:$0xf]
    %v2514 = vld [vmem:[#allocation7 + $0x68] sm:$0xf]
    %v2515 = vld [vmem:[#allocation7 + $0x6c] sm:$0xf]
    %v2516 = vld [vmem:[#allocation7 + $0x70] sm:$0xf]
    %v2517 = vld [vmem:[#allocation7 + $0x74] sm:$0xf]
    %v2518 = vld [vmem:[#allocation7 + $0x78] sm:$0xf]
    %v2519 = vld [vmem:[#allocation7 + $0x7c] sm:$0xf]
    %v2520 = vld [vmem:[%s6] sm:$0x1]
    %v2522 = vlaneseq
    %v2523 = vshrl.u32 %v2522, 7
    %v2524 = vsub.s32 0, %v2523
    %v2525 = vrot.slane %v2520, %v2524
    %v2559 = vunpack.c.l.b16 %v2488
    %v2560 = vunpack.c.l.b16 %v2489
    %v2561 = vunpack.c.l.b16 %v2490
    %v2562 = vunpack.c.l.b16 %v2491
    %v2563 = vunpack.c.l.b16 %v2492
    %v2564 = vunpack.c.l.b16 %v2493
    %v2565 = vunpack.c.l.b16 %v2494
    %v2566 = vunpack.c.l.b16 %v2495
    %v2567 = vunpack.c.l.b16 %v2496
    %v2568 = vunpack.c.l.b16 %v2497
    %v2569 = vunpack.c.l.b16 %v2498
    %v2570 = vunpack.c.l.b16 %v2499
    %v2571 = vunpack.c.l.b16 %v2500
    %v2572 = vunpack.c.l.b16 %v2501
    %v2573 = vunpack.c.l.b16 %v2502
    %v2574 = vunpack.c.l.b16 %v2503
    %v2575 = vunpack.c.l.b16 %v2504
    %v2576 = vunpack.c.l.b16 %v2505
    %v2577 = vunpack.c.l.b16 %v2506
    %v2578 = vunpack.c.l.b16 %v2507
    %v2579 = vunpack.c.l.b16 %v2508
    %v2580 = vunpack.c.l.b16 %v2509
    %v2581 = vunpack.c.l.b16 %v2510
    %v2582 = vunpack.c.l.b16 %v2511
    %v2583 = vunpack.c.l.b16 %v2512
    %v2584 = vunpack.c.l.b16 %v2513
    %v2585 = vunpack.c.l.b16 %v2514
    %v2586 = vunpack.c.l.b16 %v2515
    %v2587 = vunpack.c.l.b16 %v2516
    %v2588 = vunpack.c.l.b16 %v2517
    %v2589 = vunpack.c.l.b16 %v2518
    %v2590 = vunpack.c.l.b16 %v2519
    %v2591 = vpack.c.b16 %v2560, %v2559
    %v2592 = vpack.c.b16 %v2562, %v2561
    %v2593 = vpack.c.b16 %v2564, %v2563
    %v2594 = vpack.c.b16 %v2566, %v2565
    %v2595 = vpack.c.b16 %v2568, %v2567
    %v2596 = vpack.c.b16 %v2570, %v2569
    %v2597 = vpack.c.b16 %v2572, %v2571
    %v2598 = vpack.c.b16 %v2574, %v2573
    %v2599 = vpack.c.b16 %v2576, %v2575
    %v2600 = vpack.c.b16 %v2578, %v2577
    %v2601 = vpack.c.b16 %v2580, %v2579
    %v2602 = vpack.c.b16 %v2582, %v2581
    %v2603 = vpack.c.b16 %v2584, %v2583
    %v2604 = vpack.c.b16 %v2586, %v2585
    %v2605 = vpack.c.b16 %v2588, %v2587
    %v2606 = vpack.c.b16 %v2590, %v2589
    %2623 = vmatprep.subr.bf16.mxu0 0
    %2624 = vmatpush1.bf16.msra.mxu0 %v2591
    %2625 = vmatprep.subr.bf16.mxu0 0
    %2626 = vmatpush1.bf16.msra.mxu0 %v2592
    %2627 = vmatprep.subr.bf16.mxu0 0
    %2628 = vmatpush1.bf16.msra.mxu0 %v2593
    %2629 = vmatprep.subr.bf16.mxu0 0
    %2630 = vmatpush1.bf16.msra.mxu0 %v2594
    %2631 = vmatprep.subr.bf16.mxu0 0
    %2632 = vmatpush1.bf16.msra.mxu0 %v2595
    %2633 = vmatprep.subr.bf16.mxu0 0
    %2634 = vmatpush1.bf16.msra.mxu0 %v2596
    %2635 = vmatprep.subr.bf16.mxu0 0
    %2636 = vmatpush1.bf16.msra.mxu0 %v2597
    %2637 = vmatprep.subr.bf16.mxu0 0
    %2638 = vmatpush1.bf16.msra.mxu0 %v2598
    %2639 = vmatprep.subr.bf16.mxu0 0
    %2640 = vmatpush1.bf16.msra.mxu0 %v2599
    %2641 = vmatprep.subr.bf16.mxu0 0
    %2642 = vmatpush1.bf16.msra.mxu0 %v2600
    %2643 = vmatprep.subr.bf16.mxu0 0
    %2644 = vmatpush1.bf16.msra.mxu0 %v2601
    %2645 = vmatprep.subr.bf16.mxu0 0
    %2646 = vmatpush1.bf16.msra.mxu0 %v2602
    %2647 = vmatprep.subr.bf16.mxu0 0
    %2648 = vmatpush1.bf16.msra.mxu0 %v2603
    %2649 = vmatprep.subr.bf16.mxu0 0
    %2650 = vmatpush1.bf16.msra.mxu0 %v2604
    %2651 = vmatprep.subr.bf16.mxu0 0
    %2652 = vmatpush1.bf16.msra.mxu0 %v2605
    %2653 = vmatprep.subr.bf16.mxu0 0
    %2654 = vmatpush1.bf16.msra.mxu0 %v2606
    %2655 = vmatprep.mubr.bf16.mxu0 %v2487
    %2656 = vmatmul.mubr.bf16.gmra.mrb[0].mxu0 %v2486
    %v2657 = vpop.f32.mrb[0].mxu0
    %v2658 = vadd.f32 %v2525, %v2657
    %v2659 = vpop.f32.mrb[0].mxu0
    %v2660 = vpop.f32.mrb[0].mxu0
    %v2661 = vpop.f32.mrb[0].mxu0
    %2662 = vdwg.mxu0
    %2663 = vmax.xlane.f32.xlu0 %v2658
    %v2664 = vpop.xlane.xlu0 %2663
    %v2665 = vsub.f32 %v2658, %v2664
    %v2666 = vmul.f32 %v2665, 1.442695
    %v2667 = vpow.pop %v2666
    %2668 = vadd.xlane.f32.xlu0 %v2667
    %v2669 = vpop.xlane.xlu0 %2668
    %v2670 = vlog2.pop %v2669
    %v2671 = vmul.f32 %v2670, 0.6931472
    %v2672 = vadd.f32 %v2671, %v2664
    %v2673 = vsub.f32 %v2658, %v2672
    %2674 = vst [vmem:[%s7] sm:$0xff] %v2673
    // Predicated region
    $region46: #{relation_mlp_forward.1} parent=1 // pred_check
      _
    $region47: #{relation_mlp_forward.1} parent=1 // pred_check_branch
      %2676 = sbr.rel (0) target = $region49
    $region48: #{relation_mlp_forward.1} parent=1 // pred_region
      _
    $region49: #{relation_mlp_forward.1} parent=1 // pred_fallthru
      _
    // Predicated region
    $region50: #{relation_mlp_forward.1} parent=1 // pred_check
      _
    $region51: #{relation_mlp_forward.1} parent=1 // pred_check_branch
      %2678 = sbr.rel (0) target = $region53
    $region52: #{relation_mlp_forward.1} parent=1 // pred_region
      _
    $region53: #{relation_mlp_forward.1} parent=1 // pred_fallthru
      _
    %2679 = vsyncpa [#allocation3], 1
    %2680 = vsyncpa [#allocation5], 1
    %2681 = vsyncpa [#allocation8], 1

</llo_original>
